<compile_context>
chip_gen: v7x
topology: tpu7x:2x2x1
jax: 0.10.0
libtpu: 0.0.40
codegen_flags: <defaults>
</compile_context>

<pallas_src>
import functools

import jax
import jax.numpy as jnp
from jax.experimental import pallas as pl
from jax.experimental.pallas import tpu as pltpu

HIDDEN = 1024     # fixed hidden width of the module
CHUNK = 512       # in-kernel blocking of the HIDDEN dimension
LANE = 128


def _round_up(x, m):
    return (x + m - 1) // m * m


def _vmem_capacity_bytes():
    """Best-effort physical VMEM query; conservative 64 MiB (v7x) fallback."""
    try:
        cap = int(getattr(pltpu.get_tpu_info(), "vmem_capacity_bytes",
                          64 * 2**20))
        return max(cap, 32 * 2**20)
    except Exception:
        return 64 * 2**20


def _mlp_kernel(x_ref, w1_ref, b1_ref, w2_ref, b2_ref, o_ref):
    # x_ref:  (tm, in_eff)      token dtype (f32/bf16), cast to bf16 here
    # w1_ref: (in_eff, HIDDEN)  bf16, VMEM-resident (single-buffered)
    # b1_ref: (1, HIDDEN)       f32
    # w2_ref: (HIDDEN, out_p)   bf16, VMEM-resident (single-buffered)
    # b2_ref: (1, out_p)        f32
    # o_ref:  (tm, out_p)       token dtype
    x = x_ref[...].astype(jnp.bfloat16)
    acc = jnp.zeros(o_ref.shape, jnp.float32)
    # Block the HIDDEN dim: keeps the live h intermediate at tm*CHUNK and
    # interleaves MXU work of both matmuls (bias/ReLU/cast become VPU filler).
    for c in range(HIDDEN // CHUNK):
        lo = c * CHUNK
        h = jnp.dot(x, w1_ref[:, lo:lo + CHUNK],
                    preferred_element_type=jnp.float32)
        h = jnp.maximum(h + b1_ref[:, lo:lo + CHUNK], 0.0)        # ReLU, f32
        acc = acc + jnp.dot(h.astype(jnp.bfloat16), w2_ref[lo:lo + CHUNK, :],
                            preferred_element_type=jnp.float32)
    o_ref[...] = (acc + b2_ref[...]).astype(o_ref.dtype)


def prepare_params(w1, b1, w2, b2):
    """One-time pad/cast of the Linear params (cache outside the hot call).

    w1: (input_dim, HIDDEN), b1: (HIDDEN,)/(1,HIDDEN),
    w2: (HIDDEN, output_dim), b2: (output_dim,)/(1,output_dim).
    """
    input_dim = w1.shape[0]
    output_dim = w2.shape[1]
    in_p = input_dim if input_dim % LANE == 0 else _round_up(input_dim, LANE)
    out_p = _round_up(output_dim, LANE)        # lane-dense output (unmasked vst)
    w1p = jnp.pad(w1.astype(jnp.float32),
                  ((0, in_p - input_dim), (0, 0))).astype(jnp.bfloat16)
    w2p = jnp.pad(w2.astype(jnp.float32),
                  ((0, 0), (0, out_p - output_dim))).astype(jnp.bfloat16)
    b1p = jnp.asarray(b1, jnp.float32).reshape(1, HIDDEN)
    b2p = jnp.pad(jnp.asarray(b2, jnp.float32).reshape(1, output_dim),
                  ((0, 0), (0, out_p - output_dim)))
    return w1p, b1p, w2p, b2p, output_dim


@functools.partial(jax.jit, static_argnames=("output_dim", "tm"))
def token_receiver(token, w1p, b1p, w2p, b2p, *, output_dim, tm=None):
    """token: (M, input_dim) -> (M, output_dim). Fused MLP.

    `w1p/b1p/w2p/b2p` come from `prepare_params` (padded + bf16/f32 once).
    Rows are tiled by `tm`; no M padding (cdiv grid + Pallas edge masking).
    """
    M, input_dim = token.shape
    in_eff = w1p.shape[0]
    out_p = w2p.shape[1]
    out_dtype = token.dtype

    # Feature-dim zero-pad only when needed (exact for matmul-K); no cast here.
    if in_eff != input_dim:
        x = jnp.pad(token, ((0, 0), (0, in_eff - input_dim)))
    else:
        x = token

    vmem_cap = _vmem_capacity_bytes()
    if tm is None:
        # Bigger tiles on 128 MiB-VMEM parts (v5e/v6e); 512 cap on v7x (64 MiB).
        tm_max = 1024 if vmem_cap >= 100 * 2**20 else 512
        # Keep >= 2 row-tile steps when the batch allows it (v7x has 2 TCs
        # sharded over the parallel grid axis).
        tm = min(tm_max, max(256, _round_up(pl.cdiv(M, 2), 256)))
        tm = min(tm, _round_up(M, 256))
    tm = max(8, tm)

    grid = (pl.cdiv(M, tm),)

    x_bytes = x.dtype.itemsize
    out_bytes = jnp.dtype(out_dtype).itemsize

    # Tight VMEM budget: single-buffered weights/biases, double-buffered x/out
    # tiles, blocked h intermediate (f32 + bf16 copy) and the f32 accumulator,
    # plus a fixed compiler-scratch margin.  Explicit so the same tiling is
    # safe on v7x's 64 MiB VMEM and not needlessly capped on v5e/v6e.
    vmem_bytes = (
        in_eff * HIDDEN * 2          # W1 bf16 (Buffered(1))
        + HIDDEN * out_p * 2         # W2 bf16 (Buffered(1))
        + (HIDDEN + out_p) * 4       # biases f32
        + 2 * tm * in_eff * x_bytes  # x tiles (double-buffered)
        + 2 * tm * out_p * out_bytes # out tiles (double-buffered)
        + tm * CHUNK * (4 + 2)       # h chunk f32 + bf16 copy
        + tm * out_p * 4             # f32 accumulator
    )
    vmem_limit = int(min(max(vmem_bytes + 4 * 2**20, 16 * 2**20),
                         vmem_cap - 8 * 2**20))

    flops = 2 * M * in_eff * HIDDEN + 2 * M * HIDDEN * out_p
    bytes_accessed = (M * in_eff * x_bytes + in_eff * HIDDEN * 2
                      + HIDDEN * out_p * 2 + (HIDDEN + out_p) * 4
                      + M * out_p * out_bytes)

    # TODO(synk): for very large input_dim/output_dim where the weights stop
    # being VMEM-resident (esp. v7x 64 MiB), add K/N grid axes with an f32
    # accumulator scratch + pl.when finalize.
    out = pl.pallas_call(
        _mlp_kernel,
        out_shape=jax.ShapeDtypeStruct((M, out_p), out_dtype),
        grid_spec=pltpu.PrefetchScalarGridSpec(
            num_scalar_prefetch=0,
            grid=grid,
            in_specs=[
                pl.BlockSpec((tm, in_eff), lambda i: (i, 0)),         # x tile
                pl.BlockSpec((in_eff, HIDDEN), lambda i: (0, 0),
                             pipeline_mode=pl.Buffered(1)),           # W1
                pl.BlockSpec((1, HIDDEN), lambda i: (0, 0),
                             pipeline_mode=pl.Buffered(1)),           # b1
                pl.BlockSpec((HIDDEN, out_p), lambda i: (0, 0),
                             pipeline_mode=pl.Buffered(1)),           # W2
                pl.BlockSpec((1, out_p), lambda i: (0, 0),
                             pipeline_mode=pl.Buffered(1)),           # b2
            ],
            out_specs=pl.BlockSpec((tm, out_p), lambda i: (i, 0)),
        ),
        compiler_params=pltpu.CompilerParams(
            dimension_semantics=("parallel",),
            vmem_limit_bytes=vmem_limit,
        ),
        cost_estimate=pl.CostEstimate(
            flops=flops, transcendentals=0, bytes_accessed=bytes_accessed),
    )(x, w1p, b1p, w2p, b2p)

    if out_p != output_dim:
        out = out[:, :output_dim]
    return out


def init_params(key, input_dim, output_dim, dtype=jnp.float32):
    """Deterministic init mimicking nn.Linear's U(-1/sqrt(fan_in), 1/sqrt(fan_in))."""
    k1, k2, k3, k4 = jax.random.split(key, 4)
    bound1 = 1.0 / (input_dim ** 0.5)
    bound2 = 1.0 / (HIDDEN ** 0.5)
    w1 = jax.random.uniform(k1, (input_dim, HIDDEN), dtype, -bound1, bound1)
    b1 = jax.random.uniform(k2, (1, HIDDEN), dtype, -bound1, bound1)
    w2 = jax.random.uniform(k3, (HIDDEN, output_dim), dtype, -bound2, bound2)
    b2 = jax.random.uniform(k4, (1, output_dim), dtype, -bound2, bound2)
    return w1, b1, w2, b2


def reference(token, w1, b1, w2, b2):
    h = jnp.maximum(token @ w1 + b1, 0.0)
    return h @ w2 + b2


if __name__ == "__main__":
    key = jax.random.PRNGKey(0)
    k_params, k_x = jax.random.split(key)

    input_dim, output_dim = 32, 32
    M = 512  # number of tokens (batch)

    w1, b1, w2, b2 = init_params(k_params, input_dim, output_dim)
    token = jax.random.normal(k_x, (M, input_dim), dtype=jnp.float32)

    # One-time weight prep (padded bf16 weights / f32 biases), reused per call.
    w1p, b1p, w2p, b2p, out_dim = prepare_params(w1, b1, w2, b2)

    out = token_receiver(token, w1p, b1p, w2p, b2p, output_dim=out_dim)
    out = jax.block_until_ready(out)

    ref = reference(token, w1, b1, w2, b2)
    assert out.shape == (M, output_dim)
    assert out.dtype == token.dtype
    # bf16 matmul inputs (f32 accumulate) -> loosened tolerance vs f32 reference.
    assert jnp.allclose(out, ref, atol=3e-2, rtol=3e-2), "mismatch vs reference"

    print("KERNEL_OK")
</pallas_src>

<mosaic_0001>
module attributes {stable_mosaic.version = 11 : i64} {
  func.func @_mlp_kernel(%arg0: i32, %arg1: memref<256x128xf32, #tpu.memory_space<vmem>>, %arg2: memref<128x1024xbf16, #tpu.memory_space<vmem>>, %arg3: memref<1x1024xf32, #tpu.memory_space<vmem>>, %arg4: memref<1024x128xbf16, #tpu.memory_space<vmem>>, %arg5: memref<1x128xf32, #tpu.memory_space<vmem>>, %arg6: memref<256x128xf32, #tpu.memory_space<vmem>>) attributes {dimension_semantics = [#tpu.dimension_semantics<parallel>], iteration_bounds = array<i64: 2>, scalar_prefetch = 0 : i64, scratch_operands = 0 : i64, tpu.core_type = #tpu.core_type<tc>, window_params = [{transform_indices = @transform_0, window_bounds = array<i64: 256, 128>}, {pipeline_mode = #tpu.pipeline_mode<synchronous>, transform_indices = @transform_1, window_bounds = array<i64: 128, 1024>}, {pipeline_mode = #tpu.pipeline_mode<synchronous>, transform_indices = @transform_2, window_bounds = array<i64: 1, 1024>}, {pipeline_mode = #tpu.pipeline_mode<synchronous>, transform_indices = @transform_3, window_bounds = array<i64: 1024, 128>}, {pipeline_mode = #tpu.pipeline_mode<synchronous>, transform_indices = @transform_4, window_bounds = array<i64: 1, 128>}, {transform_indices = @transform_5, window_bounds = array<i64: 256, 128>}]} {
    %c0 = arith.constant 0 : index
    %c0_0 = arith.constant 0 : index
    %0 = vector.load %arg1[%c0, %c0_0] : memref<256x128xf32, #tpu.memory_space<vmem>>, vector<256x128xf32>
    %1 = arith.truncf %0 : vector<256x128xf32> to vector<256x128xbf16>
    %cst = arith.constant 0.000000e+00 : f32
    %2 = vector.broadcast %cst : f32 to vector<256x128xf32>
    %c0_1 = arith.constant 0 : index
    %c0_2 = arith.constant 0 : index
    %3 = vector.load %arg2[%c0_1, %c0_2] : memref<128x1024xbf16, #tpu.memory_space<vmem>>, vector<128x512xbf16>
    %cst_3 = arith.constant dense<0.000000e+00> : vector<256x512xf32>
    %4 = tpu.matmul %1, %3, %cst_3 {dimension_numbers = #tpu.dot_dimension_numbers<[1], [0], [0], [1], [0, 0, 1, 1], [], []>} : vector<256x128xbf16>, vector<128x512xbf16>, vector<256x512xf32> -> vector<256x512xf32>
    %c0_4 = arith.constant 0 : index
    %c0_5 = arith.constant 0 : index
    %5 = vector.load %arg3[%c0_4, %c0_5] : memref<1x1024xf32, #tpu.memory_space<vmem>>, vector<1x512xf32>
    %6 = vector.broadcast %5 : vector<1x512xf32> to vector<256x512xf32>
    %7 = arith.addf %4, %6 : vector<256x512xf32>
    %cst_6 = arith.constant 0.000000e+00 : f32
    %8 = vector.broadcast %cst_6 : f32 to vector<256x512xf32>
    %9 = arith.maximumf %7, %8 : vector<256x512xf32>
    %10 = arith.truncf %9 : vector<256x512xf32> to vector<256x512xbf16>
    %c0_7 = arith.constant 0 : index
    %c0_8 = arith.constant 0 : index
    %11 = vector.load %arg4[%c0_7, %c0_8] : memref<1024x128xbf16, #tpu.memory_space<vmem>>, vector<512x128xbf16>
    %cst_9 = arith.constant dense<0.000000e+00> : vector<256x128xf32>
    %12 = tpu.matmul %10, %11, %cst_9 {dimension_numbers = #tpu.dot_dimension_numbers<[1], [0], [0], [1], [0, 0, 1, 1], [], []>} : vector<256x512xbf16>, vector<512x128xbf16>, vector<256x128xf32> -> vector<256x128xf32>
    %13 = arith.addf %2, %12 : vector<256x128xf32>
    %c0_10 = arith.constant 0 : index
    %c512 = arith.constant 512 : index
    %14 = vector.load %arg2[%c0_10, %c512] : memref<128x1024xbf16, #tpu.memory_space<vmem>>, vector<128x512xbf16>
    %cst_11 = arith.constant dense<0.000000e+00> : vector<256x512xf32>
    %15 = tpu.matmul %1, %14, %cst_11 {dimension_numbers = #tpu.dot_dimension_numbers<[1], [0], [0], [1], [0, 0, 1, 1], [], []>} : vector<256x128xbf16>, vector<128x512xbf16>, vector<256x512xf32> -> vector<256x512xf32>
    %c0_12 = arith.constant 0 : index
    %c512_13 = arith.constant 512 : index
    %16 = vector.load %arg3[%c0_12, %c512_13] : memref<1x1024xf32, #tpu.memory_space<vmem>>, vector<1x512xf32>
    %17 = vector.broadcast %16 : vector<1x512xf32> to vector<256x512xf32>
    %18 = arith.addf %15, %17 : vector<256x512xf32>
    %cst_14 = arith.constant 0.000000e+00 : f32
    %19 = vector.broadcast %cst_14 : f32 to vector<256x512xf32>
    %20 = arith.maximumf %18, %19 : vector<256x512xf32>
    %21 = arith.truncf %20 : vector<256x512xf32> to vector<256x512xbf16>
    %c512_15 = arith.constant 512 : index
    %c0_16 = arith.constant 0 : index
    %22 = vector.load %arg4[%c512_15, %c0_16] : memref<1024x128xbf16, #tpu.memory_space<vmem>>, vector<512x128xbf16>
    %cst_17 = arith.constant dense<0.000000e+00> : vector<256x128xf32>
    %23 = tpu.matmul %21, %22, %cst_17 {dimension_numbers = #tpu.dot_dimension_numbers<[1], [0], [0], [1], [0, 0, 1, 1], [], []>} : vector<256x512xbf16>, vector<512x128xbf16>, vector<256x128xf32> -> vector<256x128xf32>
    %24 = arith.addf %13, %23 : vector<256x128xf32>
    %c0_18 = arith.constant 0 : index
    %c0_19 = arith.constant 0 : index
    %25 = vector.load %arg5[%c0_18, %c0_19] : memref<1x128xf32, #tpu.memory_space<vmem>>, vector<1x128xf32>
    %26 = vector.broadcast %25 : vector<1x128xf32> to vector<256x128xf32>
    %27 = arith.addf %24, %26 : vector<256x128xf32>
    %c0_20 = arith.constant 0 : index
    %c0_21 = arith.constant 0 : index
    %28 = vector.load %arg6[%c0_20, %c0_21] : memref<256x128xf32, #tpu.memory_space<vmem>>, vector<256x128xf32>
    tpu.vector_store %arg6[%c0_20, %c0_21], %27 {strides = array<i32>} : memref<256x128xf32, #tpu.memory_space<vmem>>, vector<256x128xf32>,
    return
  }
  func.func @transform_0(%arg0: i32) -> (i32, i32) {
    %c0_i32 = arith.constant 0 : i32
    %c0_i32_0 = arith.constant 0 : i32
    return %arg0, %c0_i32 : i32, i32
  }
  func.func @transform_1(%arg0: i32) -> (i32, i32) {
    %c0_i32 = arith.constant 0 : i32
    %c0_i32_0 = arith.constant 0 : i32
    %c0_i32_1 = arith.constant 0 : i32
    return %c0_i32, %c0_i32_0 : i32, i32
  }
  func.func @transform_2(%arg0: i32) -> (i32, i32) {
    %c0_i32 = arith.constant 0 : i32
    %c0_i32_0 = arith.constant 0 : i32
    %c0_i32_1 = arith.constant 0 : i32
    return %c0_i32, %c0_i32_0 : i32, i32
  }
  func.func @transform_3(%arg0: i32) -> (i32, i32) {
    %c0_i32 = arith.constant 0 : i32
    %c0_i32_0 = arith.constant 0 : i32
    %c0_i32_1 = arith.constant 0 : i32
    return %c0_i32, %c0_i32_0 : i32, i32
  }
  func.func @transform_4(%arg0: i32) -> (i32, i32) {
    %c0_i32 = arith.constant 0 : i32
    %c0_i32_0 = arith.constant 0 : i32
    %c0_i32_1 = arith.constant 0 : i32
    return %c0_i32, %c0_i32_0 : i32, i32
  }
  func.func @transform_5(%arg0: i32) -> (i32, i32) {
    %c0_i32 = arith.constant 0 : i32
    %c0_i32_0 = arith.constant 0 : i32
    return %arg0, %c0_i32 : i32, i32
  }
}

</mosaic_0001>

<llo_original>
// kernel: token_receiver.1
$region0: #{token_receiver.1}
  #allocation0 [shape = 'u32[]', space=smem, size = 0x4, offset = 0x4, fixed_abs, tag = 'smem constant byte address 0x4 - core index']
  #allocation1 [shape = 'u32[144,128]{1,0:T(1,128)}', space=vmem, size = 0x12000, scoped, tag = 'internal scratch']
  %s0 = inlined_call_operand.vmem [shape: f32[512,128], index: 0, kind: input, shape index: {}]
  %s1 = inlined_call_operand.vmem [shape: bf16[128,1024], index: 1, kind: input, shape index: {}]
  %s2 = inlined_call_operand.vmem [shape: f32[1,1024], index: 2, kind: input, shape index: {}]
  %s3 = inlined_call_operand.vmem [shape: bf16[1024,128], index: 3, kind: input, shape index: {}]
  %s4 = inlined_call_operand.vmem [shape: f32[1,128], index: 4, kind: input, shape index: {}]
  %s5 = inlined_call_operand.vmem [shape: f32[512,128], index: 5, kind: output, shape index: {}]
  %s6 = sld [smem:[#allocation0]]
  $region53: #{token_receiver.1} parent=0
    _
  %s8 = ssub.s32 1, %s6
  %s9 = scalar_select 0, %s8, %s6
  loop: start=0, step=1, limit=4
  $region2: #{token_receiver.1} parent=0 // loop_pre_header
    _
  $region3: #{token_receiver.1} parent=0 // loop_header
    %s11 = sphi 0, %s15
    %p12 = scmp.ge.s32.totalorder %s11, 4
    %s21 = sphi 0, %s23
    %s24 = sphi 0, %s21
    %s25 = sphi 0, %s24
    %s41 = sphi 0, %s25
    %s45 = sphi 0, %s45
    %s47 = sphi 0, %s45
    %s48 = sphi 0, %s47
    %s62 = sphi 0, %s48
    %s66 = sphi 0, %s66
    %s68 = sphi 0, %s66
    %s69 = sphi 0, %s68
    %s83 = sphi 0, %s69
    %s87 = sphi 0, %s87
    %s89 = sphi 0, %s87
    %s90 = sphi 0, %s89
    %s104 = sphi 0, %s90
    %s108 = sphi 0, %s108
    %s110 = sphi 0, %s108
    %s111 = sphi 0, %s110
    %s125 = sphi 0, %s111
    %s131 = sphi 0, %s133
    %s134 = sphi 0, %s131
    %s135 = sphi 0, %s134
    %s151 = sphi 0, %s135
  $region4: #{token_receiver.1} parent=0 // loop_header_branch
    %14 = sbr.rel (%p12) target = $region8
  $region5: #{token_receiver.1} parent=0 // loop_body
    %s16 = ssub.s32 %s11, 1
    %s17 = ssub.s32 %s11, 2
    %s18 = sadd.s32 %s11, 1
    %s19 = ssub.s32 %s11, %s18
    %p20 = scmp.eq.s32.totalorder %s19, 0
    %s22 = sadd.s32 %s21, 1
    %s23 = scalar_select %p20, %s21, %s22
    %p26 = pneg %p20
    %p27 = scmp.eq.s32.totalorder %s11, 1
    %p28 = por %p26, %p27
    %p29 = scmp.ne.s32.totalorder %s21, %s24
    %p30 = scmp.eq.s32.totalorder %s11, 0
    %p31 = por %p29, %p30
    %p32 = scmp.ne.s32.totalorder %s21, %s24
    %p33 = scmp.eq.s32.totalorder %s16, 1
    %p34 = por %p32, %p33
    %p35 = scmp.ne.s32.totalorder %s24, %s25
    %p36 = scmp.eq.s32.totalorder %s16, 0
    %p37 = por %p35, %p36
    %p38 = scmp.ne.s32.totalorder %s24, %s25
    %p39 = scmp.eq.s32.totalorder %s17, 1
    %p40 = por %p38, %p39
    %p42 = scmp.ne.s32.totalorder %s25, %s41
    %p43 = scmp.eq.s32.totalorder %s17, 0
    %p44 = por %p42, %p43
    %s46 = sadd.s32 %s45, 1
    %p49 = scmp.eq.s32.totalorder %s11, 1
    %p50 = scmp.ne.s32.totalorder %s45, %s47
    %p51 = scmp.eq.s32.totalorder %s11, 0
    %p52 = por %p50, %p51
    %p53 = scmp.ne.s32.totalorder %s45, %s47
    %p54 = scmp.eq.s32.totalorder %s16, 1
    %p55 = por %p53, %p54
    %p56 = scmp.ne.s32.totalorder %s47, %s48
    %p57 = scmp.eq.s32.totalorder %s16, 0
    %p58 = por %p56, %p57
    %p59 = scmp.ne.s32.totalorder %s47, %s48
    %p60 = scmp.eq.s32.totalorder %s17, 1
    %p61 = por %p59, %p60
    %p63 = scmp.ne.s32.totalorder %s48, %s62
    %p64 = scmp.eq.s32.totalorder %s17, 0
    %p65 = por %p63, %p64
    %s67 = sadd.s32 %s66, 1
    %p70 = scmp.eq.s32.totalorder %s11, 1
    %p71 = scmp.ne.s32.totalorder %s66, %s68
    %p72 = scmp.eq.s32.totalorder %s11, 0
    %p73 = por %p71, %p72
    %p74 = scmp.ne.s32.totalorder %s66, %s68
    %p75 = scmp.eq.s32.totalorder %s16, 1
    %p76 = por %p74, %p75
    %p77 = scmp.ne.s32.totalorder %s68, %s69
    %p78 = scmp.eq.s32.totalorder %s16, 0
    %p79 = por %p77, %p78
    %p80 = scmp.ne.s32.totalorder %s68, %s69
    %p81 = scmp.eq.s32.totalorder %s17, 1
    %p82 = por %p80, %p81
    %p84 = scmp.ne.s32.totalorder %s69, %s83
    %p85 = scmp.eq.s32.totalorder %s17, 0
    %p86 = por %p84, %p85
    %s88 = sadd.s32 %s87, 1
    %p91 = scmp.eq.s32.totalorder %s11, 1
    %p92 = scmp.ne.s32.totalorder %s87, %s89
    %p93 = scmp.eq.s32.totalorder %s11, 0
    %p94 = por %p92, %p93
    %p95 = scmp.ne.s32.totalorder %s87, %s89
    %p96 = scmp.eq.s32.totalorder %s16, 1
    %p97 = por %p95, %p96
    %p98 = scmp.ne.s32.totalorder %s89, %s90
    %p99 = scmp.eq.s32.totalorder %s16, 0
    %p100 = por %p98, %p99
    %p101 = scmp.ne.s32.totalorder %s89, %s90
    %p102 = scmp.eq.s32.totalorder %s17, 1
    %p103 = por %p101, %p102
    %p105 = scmp.ne.s32.totalorder %s90, %s104
    %p106 = scmp.eq.s32.totalorder %s17, 0
    %p107 = por %p105, %p106
    %s109 = sadd.s32 %s108, 1
    %p112 = scmp.eq.s32.totalorder %s11, 1
    %p113 = scmp.ne.s32.totalorder %s108, %s110
    %p114 = scmp.eq.s32.totalorder %s11, 0
    %p115 = por %p113, %p114
    %p116 = scmp.ne.s32.totalorder %s108, %s110
    %p117 = scmp.eq.s32.totalorder %s16, 1
    %p118 = por %p116, %p117
    %p119 = scmp.ne.s32.totalorder %s110, %s111
    %p120 = scmp.eq.s32.totalorder %s16, 0
    %p121 = por %p119, %p120
    %p122 = scmp.ne.s32.totalorder %s110, %s111
    %p123 = scmp.eq.s32.totalorder %s17, 1
    %p124 = por %p122, %p123
    %p126 = scmp.ne.s32.totalorder %s111, %s125
    %p127 = scmp.eq.s32.totalorder %s17, 0
    %p128 = por %p126, %p127
    %s129 = ssub.s32 %s11, %s18
    %p130 = scmp.eq.s32.totalorder %s129, 0
    %s132 = sadd.s32 %s131, 1
    %s133 = scalar_select %p130, %s131, %s132
    %p136 = pneg %p130
    %p137 = scmp.eq.s32.totalorder %s11, 1
    %p138 = por %p136, %p137
    %p139 = scmp.ne.s32.totalorder %s131, %s134
    %p140 = scmp.eq.s32.totalorder %s11, 0
    %p141 = por %p139, %p140
    %p142 = scmp.ne.s32.totalorder %s131, %s134
    %p143 = scmp.eq.s32.totalorder %s16, 1
    %p144 = por %p142, %p143
    %p145 = scmp.ne.s32.totalorder %s134, %s135
    %p146 = scmp.eq.s32.totalorder %s16, 0
    %p147 = por %p145, %p146
    %p148 = scmp.ne.s32.totalorder %s134, %s135
    %p149 = scmp.eq.s32.totalorder %s17, 1
    %p150 = por %p148, %p149
    %p152 = scmp.ne.s32.totalorder %s135, %s151
    %p153 = scmp.eq.s32.totalorder %s17, 0
    %p154 = por %p152, %p153
    %p155 = scmp.le.s32.totalorder 1, %s11
    %p156 = scmp.lt.s32.totalorder %s11, 3
    %p157 = pnand %p155, %p156
    %p158 = pneg %p157
    // Predicated region
    $region9: #{token_receiver.1} parent=5 // pred_check
      _
    $region10: #{token_receiver.1} parent=5 // pred_check_branch
      %160 = sbr.rel (%p157) target = $region12
    $region11: #{token_receiver.1} parent=5 // pred_region
      %s161 = ssub.s32 %s11, 1
      // Predicated region
      $region13: #{token_receiver.1} parent=11 // pred_check
        %p162 = pneg %p58
      $region14: #{token_receiver.1} parent=11 // pred_check_branch
        %164 = sbr.rel (%p162) target = $region16
      $region15: #{token_receiver.1} parent=11 // pred_region
        _
      $region16: #{token_receiver.1} parent=11 // pred_fallthru
        _
      // Predicated region
      $region17: #{token_receiver.1} parent=11 // pred_check
        %p165 = pneg %p79
      $region18: #{token_receiver.1} parent=11 // pred_check_branch
        %167 = sbr.rel (%p165) target = $region20
      $region19: #{token_receiver.1} parent=11 // pred_region
        _
      $region20: #{token_receiver.1} parent=11 // pred_fallthru
        _
      // Predicated region
      $region21: #{token_receiver.1} parent=11 // pred_check
        %p168 = pneg %p100
      $region22: #{token_receiver.1} parent=11 // pred_check_branch
        %170 = sbr.rel (%p168) target = $region24
      $region23: #{token_receiver.1} parent=11 // pred_region
        _
      $region24: #{token_receiver.1} parent=11 // pred_fallthru
        _
      // Predicated region
      $region25: #{token_receiver.1} parent=11 // pred_check
        %p171 = pneg %p121
      $region26: #{token_receiver.1} parent=11 // pred_check_branch
        %173 = sbr.rel (%p171) target = $region28
      $region27: #{token_receiver.1} parent=11 // pred_region
        _
      $region28: #{token_receiver.1} parent=11 // pred_fallthru
        _
    $region12: #{token_receiver.1} parent=5 // pred_fallthru
      _
    %p174 = scmp.lt.s32.totalorder %s11, 2
    // Predicated region
    $region29: #{token_receiver.1} parent=5 // pred_check
      %p175 = pneg %p174
    $region30: #{token_receiver.1} parent=5 // pred_check_branch
      %177 = sbr.rel (%p175) target = $region32
    $region31: #{token_receiver.1} parent=5 // pred_region
      // Predicated region
      $region33: #{token_receiver.1} parent=31 // pred_check
        %p178 = pneg %p31
      $region34: #{token_receiver.1} parent=31 // pred_check_branch
        %180 = sbr.rel (%p178) target = $region36
      $region35: #{token_receiver.1} parent=31 // pred_region
        %s181 = smul.u32 32, %s11
        %p182 = scmp.lt.s32.totalorder %s181, 63
        %s183 = scalar_select %p182, %s181, 63
        %s184 = smul.addr %s183, 8
        %s185 = scalar_lea.vmem %s0, %s184
        %s186 = smul.u32 32, %s11
      $region36: #{token_receiver.1} parent=31 // pred_fallthru
        _
    $region32: #{token_receiver.1} parent=5 // pred_fallthru
      _
    %p187 = scmp.le.s32.totalorder 1, %s11
    %p188 = scmp.lt.s32.totalorder %s11, 3
    %p189 = pnand %p187, %p188
    %p190 = pneg %p189
    // Predicated region
    $region37: #{token_receiver.1} parent=5 // pred_check
      _
    $region38: #{token_receiver.1} parent=5 // pred_check_branch
      %192 = sbr.rel (%p189) target = $region40
    $region39: #{token_receiver.1} parent=5 // pred_region
      %s193 = ssub.s32 %s11, 1
      %s194 = smul.u32 32, %s16
      %p195 = scmp.lt.s32.totalorder %s194, 63
      %s196 = scalar_select %p195, %s194, 63
      %s197 = smul.addr %s196, 8
      %s198 = scalar_lea.vmem %s0, %s197
      %p199 = pneg %p37
      %p200 = pneg %p34
      %p201 = pneg %p58
      %p202 = pneg %p55
      %p203 = pneg %p79
      %p204 = pneg %p76
      %p205 = pneg %p100
      %p206 = pneg %p97
      %p207 = pneg %p121
      %p208 = pneg %p118
      %p209 = pneg %p147
      %p210 = pneg %p144
      %s211 = smul.u32 32, %s16
      %p212 = scmp.lt.s32.totalorder %s211, 63
      %s213 = scalar_select %p212, %s211, 63
      %s214 = smul.addr %s213, 8
      %s215 = scalar_lea.vmem %s5, %s214
      %s216 = smul.u32 32, %s16
      %p217 = scmp.lt.s32.totalorder %s216, 63
      %s218 = scalar_select %p217, %s216, 63
      %s219 = smul.addr %s218, 8
      %s220 = scalar_lea.vmem %s0, %s219
      %s221 = smul.u32 32, %s16
      %s222 = smul.u32 32, %s16
      %p223 = scmp.lt.s32.totalorder %s222, 63
      %s224 = scalar_select %p223, %s222, 63
      %s225 = smul.addr %s224, 8
      %s226 = scalar_lea.vmem %s5, %s225
      %s227 = smul.u32 32, %s16
      %v229 = vld [vmem:[%s220] sm:$0xff]
      %v230 = vld [vmem:[%s220 + $0x8] sm:$0xff]
      %v231 = vld [vmem:[%s220 + $0x10] sm:$0xff]
      %v232 = vld [vmem:[%s220 + $0x18] sm:$0xff]
      %v233 = vld [vmem:[%s220 + $0x20] sm:$0xff]
      %v234 = vld [vmem:[%s220 + $0x28] sm:$0xff]
      %v235 = vld [vmem:[%s220 + $0x30] sm:$0xff]
      %v236 = vld [vmem:[%s220 + $0x38] sm:$0xff]
      %v237 = vld [vmem:[%s220 + $0x40] sm:$0xff]
      %v238 = vld [vmem:[%s220 + $0x48] sm:$0xff]
      %v239 = vld [vmem:[%s220 + $0x50] sm:$0xff]
      %v240 = vld [vmem:[%s220 + $0x58] sm:$0xff]
      %v241 = vld [vmem:[%s220 + $0x60] sm:$0xff]
      %v242 = vld [vmem:[%s220 + $0x68] sm:$0xff]
      %v243 = vld [vmem:[%s220 + $0x70] sm:$0xff]
      %v244 = vld [vmem:[%s220 + $0x78] sm:$0xff]
      %v245 = vld [vmem:[%s220 + $0x80] sm:$0xff]
      %v246 = vld [vmem:[%s220 + $0x88] sm:$0xff]
      %v247 = vld [vmem:[%s220 + $0x90] sm:$0xff]
      %v248 = vld [vmem:[%s220 + $0x98] sm:$0xff]
      %v249 = vld [vmem:[%s220 + $0xa0] sm:$0xff]
      %v250 = vld [vmem:[%s220 + $0xa8] sm:$0xff]
      %v251 = vld [vmem:[%s220 + $0xb0] sm:$0xff]
      %v252 = vld [vmem:[%s220 + $0xb8] sm:$0xff]
      %v253 = vld [vmem:[%s220 + $0xc0] sm:$0xff]
      %v254 = vld [vmem:[%s220 + $0xc8] sm:$0xff]
      %v255 = vld [vmem:[%s220 + $0xd0] sm:$0xff]
      %v256 = vld [vmem:[%s220 + $0xd8] sm:$0xff]
      %v257 = vld [vmem:[%s220 + $0xe0] sm:$0xff]
      %v258 = vld [vmem:[%s220 + $0xe8] sm:$0xff]
      %v259 = vld [vmem:[%s220 + $0xf0] sm:$0xff]
      %v260 = vld [vmem:[%s220 + $0xf8] sm:$0xff]
      %v261 = vpack.c.bf16 %v230, %v229
      %v262 = vpack.c.bf16 %v232, %v231
      %v263 = vpack.c.bf16 %v234, %v233
      %v264 = vpack.c.bf16 %v236, %v235
      %v265 = vpack.c.bf16 %v238, %v237
      %v266 = vpack.c.bf16 %v240, %v239
      %v267 = vpack.c.bf16 %v242, %v241
      %v268 = vpack.c.bf16 %v244, %v243
      %v269 = vpack.c.bf16 %v246, %v245
      %v270 = vpack.c.bf16 %v248, %v247
      %v271 = vpack.c.bf16 %v250, %v249
      %v272 = vpack.c.bf16 %v252, %v251
      %v273 = vpack.c.bf16 %v254, %v253
      %v274 = vpack.c.bf16 %v256, %v255
      %v275 = vpack.c.bf16 %v258, %v257
      %v276 = vpack.c.bf16 %v260, %v259
      %v277 = vld [vmem:[%s1] sm:$0xff]
      %v278 = vld [vmem:[%s1 + $0x8] sm:$0xff]
      %v279 = vld [vmem:[%s1 + $0x20] sm:$0xff]
      %v280 = vld [vmem:[%s1 + $0x28] sm:$0xff]
      %v281 = vld [vmem:[%s1 + $0x40] sm:$0xff]
      %v282 = vld [vmem:[%s1 + $0x48] sm:$0xff]
      %v283 = vld [vmem:[%s1 + $0x60] sm:$0xff]
      %v284 = vld [vmem:[%s1 + $0x68] sm:$0xff]
      %v285 = vld [vmem:[%s1 + $0x80] sm:$0xff]
      %v286 = vld [vmem:[%s1 + $0x88] sm:$0xff]
      %v287 = vld [vmem:[%s1 + $0xa0] sm:$0xff]
      %v288 = vld [vmem:[%s1 + $0xa8] sm:$0xff]
      %v289 = vld [vmem:[%s1 + $0xc0] sm:$0xff]
      %v290 = vld [vmem:[%s1 + $0xc8] sm:$0xff]
      %v291 = vld [vmem:[%s1 + $0xe0] sm:$0xff]
      %v292 = vld [vmem:[%s1 + $0xe8] sm:$0xff]
      %v293 = vld [vmem:[%s1 + $0x100] sm:$0xff]
      %v294 = vld [vmem:[%s1 + $0x108] sm:$0xff]
      %v295 = vld [vmem:[%s1 + $0x120] sm:$0xff]
      %v296 = vld [vmem:[%s1 + $0x128] sm:$0xff]
      %v297 = vld [vmem:[%s1 + $0x140] sm:$0xff]
      %v298 = vld [vmem:[%s1 + $0x148] sm:$0xff]
      %v299 = vld [vmem:[%s1 + $0x160] sm:$0xff]
      %v300 = vld [vmem:[%s1 + $0x168] sm:$0xff]
      %v301 = vld [vmem:[%s1 + $0x180] sm:$0xff]
      %v302 = vld [vmem:[%s1 + $0x188] sm:$0xff]
      %v303 = vld [vmem:[%s1 + $0x1a0] sm:$0xff]
      %v304 = vld [vmem:[%s1 + $0x1a8] sm:$0xff]
      %v305 = vld [vmem:[%s1 + $0x1c0] sm:$0xff]
      %v306 = vld [vmem:[%s1 + $0x1c8] sm:$0xff]
      %v307 = vld [vmem:[%s1 + $0x1e0] sm:$0xff]
      %v308 = vld [vmem:[%s1 + $0x1e8] sm:$0xff]
      %v309 = vld [vmem:[%s2] sm:$0xf]
      %v311 = vlaneseq
      %v312 = vshrl.u32 %v311, 7
      %v313 = vsub.s32 0, %v312
      %v314 = vrot.slane %v309, %v313
      %v315 = vlaneseq
      %v316 = vshrl.u32 %v315, 7
      %v317 = vsub.s32 1, %v316
      %v318 = vrot.slane %v309, %v317
      %v319 = vlaneseq
      %v320 = vshrl.u32 %v319, 7
      %v321 = vsub.s32 2, %v320
      %v322 = vrot.slane %v309, %v321
      %v323 = vlaneseq
      %v324 = vshrl.u32 %v323, 7
      %v325 = vsub.s32 3, %v324
      %v326 = vrot.slane %v309, %v325
      %v363 = vunpack.c.l.b16 %v277
      %v364 = vunpack.c.h.b16 %v277
      %v365 = vunpack.c.l.b16 %v278
      %v366 = vunpack.c.h.b16 %v278
      %v367 = vunpack.c.l.b16 %v279
      %v368 = vunpack.c.h.b16 %v279
      %v369 = vunpack.c.l.b16 %v280
      %v370 = vunpack.c.h.b16 %v280
      %v371 = vunpack.c.l.b16 %v281
      %v372 = vunpack.c.h.b16 %v281
      %v373 = vunpack.c.l.b16 %v282
      %v374 = vunpack.c.h.b16 %v282
      %v375 = vunpack.c.l.b16 %v283
      %v376 = vunpack.c.h.b16 %v283
      %v377 = vunpack.c.l.b16 %v284
      %v378 = vunpack.c.h.b16 %v284
      %v379 = vunpack.c.l.b16 %v285
      %v380 = vunpack.c.h.b16 %v285
      %v381 = vunpack.c.l.b16 %v286
      %v382 = vunpack.c.h.b16 %v286
      %v383 = vunpack.c.l.b16 %v287
      %v384 = vunpack.c.h.b16 %v287
      %v385 = vunpack.c.l.b16 %v288
      %v386 = vunpack.c.h.b16 %v288
      %v387 = vunpack.c.l.b16 %v289
      %v388 = vunpack.c.h.b16 %v289
      %v389 = vunpack.c.l.b16 %v290
      %v390 = vunpack.c.h.b16 %v290
      %v391 = vunpack.c.l.b16 %v291
      %v392 = vunpack.c.h.b16 %v291
      %v393 = vunpack.c.l.b16 %v292
      %v394 = vunpack.c.h.b16 %v292
      %v395 = vunpack.c.l.b16 %v293
      %v396 = vunpack.c.h.b16 %v293
      %v397 = vunpack.c.l.b16 %v294
      %v398 = vunpack.c.h.b16 %v294
      %v399 = vunpack.c.l.b16 %v295
      %v400 = vunpack.c.h.b16 %v295
      %v401 = vunpack.c.l.b16 %v296
      %v402 = vunpack.c.h.b16 %v296
      %v403 = vunpack.c.l.b16 %v297
      %v404 = vunpack.c.h.b16 %v297
      %v405 = vunpack.c.l.b16 %v298
      %v406 = vunpack.c.h.b16 %v298
      %v407 = vunpack.c.l.b16 %v299
      %v408 = vunpack.c.h.b16 %v299
      %v409 = vunpack.c.l.b16 %v300
      %v410 = vunpack.c.h.b16 %v300
      %v411 = vunpack.c.l.b16 %v301
      %v412 = vunpack.c.h.b16 %v301
      %v413 = vunpack.c.l.b16 %v302
      %v414 = vunpack.c.h.b16 %v302
      %v415 = vunpack.c.l.b16 %v303
      %v416 = vunpack.c.h.b16 %v303
      %v417 = vunpack.c.l.b16 %v304
      %v418 = vunpack.c.h.b16 %v304
      %v419 = vunpack.c.l.b16 %v305
      %v420 = vunpack.c.h.b16 %v305
      %v421 = vunpack.c.l.b16 %v306
      %v422 = vunpack.c.h.b16 %v306
      %v423 = vunpack.c.l.b16 %v307
      %v424 = vunpack.c.h.b16 %v307
      %v425 = vunpack.c.l.b16 %v308
      %v426 = vunpack.c.h.b16 %v308
      %v427 = vpack.c.b16 %v367, %v363
      %v428 = vpack.c.b16 %v368, %v364
      %v429 = vpack.c.b16 %v369, %v365
      %v430 = vpack.c.b16 %v370, %v366
      %v431 = vpack.c.b16 %v375, %v371
      %v432 = vpack.c.b16 %v376, %v372
      %v433 = vpack.c.b16 %v377, %v373
      %v434 = vpack.c.b16 %v378, %v374
      %v435 = vpack.c.b16 %v383, %v379
      %v436 = vpack.c.b16 %v384, %v380
      %v437 = vpack.c.b16 %v385, %v381
      %v438 = vpack.c.b16 %v386, %v382
      %v439 = vpack.c.b16 %v391, %v387
      %v440 = vpack.c.b16 %v392, %v388
      %v441 = vpack.c.b16 %v393, %v389
      %v442 = vpack.c.b16 %v394, %v390
      %v443 = vpack.c.b16 %v399, %v395
      %v444 = vpack.c.b16 %v400, %v396
      %v445 = vpack.c.b16 %v401, %v397
      %v446 = vpack.c.b16 %v402, %v398
      %v447 = vpack.c.b16 %v407, %v403
      %v448 = vpack.c.b16 %v408, %v404
      %v449 = vpack.c.b16 %v409, %v405
      %v450 = vpack.c.b16 %v410, %v406
      %v451 = vpack.c.b16 %v415, %v411
      %v452 = vpack.c.b16 %v416, %v412
      %v453 = vpack.c.b16 %v417, %v413
      %v454 = vpack.c.b16 %v418, %v414
      %v455 = vpack.c.b16 %v423, %v419
      %v456 = vpack.c.b16 %v424, %v420
      %v457 = vpack.c.b16 %v425, %v421
      %v458 = vpack.c.b16 %v426, %v422
      %491 = vmatprep.subr.bf16.mxu0 %v428
      %492 = vmatpush1.bf16.msra.mxu0 %v427
      %493 = vmatprep.subr.bf16.mxu0 %v432
      %494 = vmatpush1.bf16.msra.mxu0 %v431
      %495 = vmatprep.subr.bf16.mxu0 %v436
      %496 = vmatpush1.bf16.msra.mxu0 %v435
      %497 = vmatprep.subr.bf16.mxu0 %v440
      %498 = vmatpush1.bf16.msra.mxu0 %v439
      %499 = vmatprep.subr.bf16.mxu0 %v444
      %500 = vmatpush1.bf16.msra.mxu0 %v443
      %501 = vmatprep.subr.bf16.mxu0 %v448
      %502 = vmatpush1.bf16.msra.mxu0 %v447
      %503 = vmatprep.subr.bf16.mxu0 %v452
      %504 = vmatpush1.bf16.msra.mxu0 %v451
      %505 = vmatprep.subr.bf16.mxu0 %v456
      %506 = vmatpush1.bf16.msra.mxu0 %v455
      %507 = vmatprep.subr.bf16.mxu0 0
      %508 = vmatpush1.bf16.msra.mxu0 0
      %509 = vmatprep.subr.bf16.mxu0 0
      %510 = vmatpush1.bf16.msra.mxu0 0
      %511 = vmatprep.subr.bf16.mxu0 0
      %512 = vmatpush1.bf16.msra.mxu0 0
      %513 = vmatprep.subr.bf16.mxu0 0
      %514 = vmatpush1.bf16.msra.mxu0 0
      %515 = vmatprep.subr.bf16.mxu0 0
      %516 = vmatpush1.bf16.msra.mxu0 0
      %517 = vmatprep.subr.bf16.mxu0 0
      %518 = vmatpush1.bf16.msra.mxu0 0
      %519 = vmatprep.subr.bf16.mxu0 0
      %520 = vmatpush1.bf16.msra.mxu0 0
      %521 = vmatprep.subr.bf16.mxu0 0
      %522 = vmatpush1.bf16.msra.mxu0 0
      %523 = vmatprep.mubr.bf16.mxu0 0
      %524 = vmatmul.mubr.bf16.gmra.mrb[0].mxu0 %v261
      %v525 = vpop.f32.mrb[0].mxu0
      %v526 = vadd.f32 %v314, %v525
      %v527 = vpop.f32.mrb[0].mxu0
      %v528 = vadd.f32 %v318, %v527
      %v529 = vpop.f32.mrb[0].mxu0
      %v530 = vadd.f32 %v314, %v529
      %v531 = vpop.f32.mrb[0].mxu0
      %v532 = vadd.f32 %v318, %v531
      %533 = vmatprep.mubr.bf16.mxu0 0
      %534 = vmatmul.mubr.bf16.gmra.mrb[0].mxu0 %v262
      %v535 = vpop.f32.mrb[0].mxu0
      %v536 = vadd.f32 %v314, %v535
      %v537 = vpop.f32.mrb[0].mxu0
      %v538 = vadd.f32 %v318, %v537
      %v539 = vpop.f32.mrb[0].mxu0
      %v540 = vadd.f32 %v314, %v539
      %v541 = vpop.f32.mrb[0].mxu0
      %v542 = vadd.f32 %v318, %v541
      %543 = vmatprep.mubr.bf16.mxu0 0
      %544 = vmatmul.mubr.bf16.gmra.mrb[0].mxu0 %v263
      %v545 = vpop.f32.mrb[0].mxu0
      %v546 = vadd.f32 %v314, %v545
      %v547 = vpop.f32.mrb[0].mxu0
      %v548 = vadd.f32 %v318, %v547
      %v549 = vpop.f32.mrb[0].mxu0
      %v550 = vadd.f32 %v314, %v549
      %v551 = vpop.f32.mrb[0].mxu0
      %v552 = vadd.f32 %v318, %v551
      %553 = vmatprep.mubr.bf16.mxu0 0
      %554 = vmatmul.mubr.bf16.gmra.mrb[0].mxu0 %v264
      %v555 = vpop.f32.mrb[0].mxu0
      %v556 = vadd.f32 %v314, %v555
      %v557 = vpop.f32.mrb[0].mxu0
      %v558 = vadd.f32 %v318, %v557
      %v559 = vpop.f32.mrb[0].mxu0
      %v560 = vadd.f32 %v314, %v559
      %v561 = vpop.f32.mrb[0].mxu0
      %v562 = vadd.f32 %v318, %v561
      %563 = vmatprep.mubr.bf16.mxu0 0
      %564 = vmatmul.mubr.bf16.gmra.mrb[0].mxu0 %v265
      %v565 = vpop.f32.mrb[0].mxu0
      %v566 = vadd.f32 %v314, %v565
      %v567 = vpop.f32.mrb[0].mxu0
      %v568 = vadd.f32 %v318, %v567
      %v569 = vpop.f32.mrb[0].mxu0
      %v570 = vadd.f32 %v314, %v569
      %v571 = vpop.f32.mrb[0].mxu0
      %v572 = vadd.f32 %v318, %v571
      %573 = vmatprep.mubr.bf16.mxu0 0
      %574 = vmatmul.mubr.bf16.gmra.mrb[0].mxu0 %v266
      %v575 = vpop.f32.mrb[0].mxu0
      %v576 = vadd.f32 %v314, %v575
      %v577 = vpop.f32.mrb[0].mxu0
      %v578 = vadd.f32 %v318, %v577
      %v579 = vpop.f32.mrb[0].mxu0
      %v580 = vadd.f32 %v314, %v579
      %v581 = vpop.f32.mrb[0].mxu0
      %v582 = vadd.f32 %v318, %v581
      %583 = vmatprep.mubr.bf16.mxu0 0
      %584 = vmatmul.mubr.bf16.gmra.mrb[0].mxu0 %v267
      %v585 = vpop.f32.mrb[0].mxu0
      %v586 = vadd.f32 %v314, %v585
      %v587 = vpop.f32.mrb[0].mxu0
      %v588 = vadd.f32 %v318, %v587
      %v589 = vpop.f32.mrb[0].mxu0
      %v590 = vadd.f32 %v314, %v589
      %v591 = vpop.f32.mrb[0].mxu0
      %v592 = vadd.f32 %v318, %v591
      %593 = vmatprep.mubr.bf16.mxu0 0
      %594 = vmatmul.mubr.bf16.gmra.mrb[0].mxu0 %v268
      %v595 = vpop.f32.mrb[0].mxu0
      %v596 = vadd.f32 %v314, %v595
      %v597 = vpop.f32.mrb[0].mxu0
      %v598 = vadd.f32 %v318, %v597
      %v599 = vpop.f32.mrb[0].mxu0
      %v600 = vadd.f32 %v314, %v599
      %v601 = vpop.f32.mrb[0].mxu0
      %v602 = vadd.f32 %v318, %v601
      %603 = vmatprep.mubr.bf16.mxu0 0
      %604 = vmatmul.mubr.bf16.gmra.mrb[0].mxu0 %v269
      %v605 = vpop.f32.mrb[0].mxu0
      %v606 = vadd.f32 %v314, %v605
      %v607 = vpop.f32.mrb[0].mxu0
      %v608 = vadd.f32 %v318, %v607
      %v609 = vpop.f32.mrb[0].mxu0
      %v610 = vadd.f32 %v314, %v609
      %v611 = vpop.f32.mrb[0].mxu0
      %v612 = vadd.f32 %v318, %v611
      %613 = vmatprep.mubr.bf16.mxu0 0
      %614 = vmatmul.mubr.bf16.gmra.mrb[0].mxu0 %v270
      %v615 = vpop.f32.mrb[0].mxu0
      %v616 = vadd.f32 %v314, %v615
      %v617 = vpop.f32.mrb[0].mxu0
      %v618 = vadd.f32 %v318, %v617
      %v619 = vpop.f32.mrb[0].mxu0
      %v620 = vadd.f32 %v314, %v619
      %v621 = vpop.f32.mrb[0].mxu0
      %v622 = vadd.f32 %v318, %v621
      %623 = vmatprep.mubr.bf16.mxu0 0
      %624 = vmatmul.mubr.bf16.gmra.mrb[0].mxu0 %v271
      %v625 = vpop.f32.mrb[0].mxu0
      %v626 = vadd.f32 %v314, %v625
      %v627 = vpop.f32.mrb[0].mxu0
      %v628 = vadd.f32 %v318, %v627
      %v629 = vpop.f32.mrb[0].mxu0
      %v630 = vadd.f32 %v314, %v629
      %v631 = vpop.f32.mrb[0].mxu0
      %v632 = vadd.f32 %v318, %v631
      %633 = vmatprep.mubr.bf16.mxu0 0
      %634 = vmatmul.mubr.bf16.gmra.mrb[0].mxu0 %v272
      %v635 = vpop.f32.mrb[0].mxu0
      %v636 = vadd.f32 %v314, %v635
      %v637 = vpop.f32.mrb[0].mxu0
      %v638 = vadd.f32 %v318, %v637
      %v639 = vpop.f32.mrb[0].mxu0
      %v640 = vadd.f32 %v314, %v639
      %v641 = vpop.f32.mrb[0].mxu0
      %v642 = vadd.f32 %v318, %v641
      %643 = vmatprep.mubr.bf16.mxu0 0
      %644 = vmatmul.mubr.bf16.gmra.mrb[0].mxu0 %v273
      %v645 = vpop.f32.mrb[0].mxu0
      %v646 = vadd.f32 %v314, %v645
      %v647 = vpop.f32.mrb[0].mxu0
      %v648 = vadd.f32 %v318, %v647
      %v649 = vpop.f32.mrb[0].mxu0
      %v650 = vadd.f32 %v314, %v649
      %v651 = vpop.f32.mrb[0].mxu0
      %v652 = vadd.f32 %v318, %v651
      %653 = vmatprep.mubr.bf16.mxu0 0
      %654 = vmatmul.mubr.bf16.gmra.mrb[0].mxu0 %v274
      %v655 = vpop.f32.mrb[0].mxu0
      %v656 = vadd.f32 %v314, %v655
      %v657 = vpop.f32.mrb[0].mxu0
      %v658 = vadd.f32 %v318, %v657
      %v659 = vpop.f32.mrb[0].mxu0
      %v660 = vadd.f32 %v314, %v659
      %v661 = vpop.f32.mrb[0].mxu0
      %v662 = vadd.f32 %v318, %v661
      %663 = vmatprep.mubr.bf16.mxu0 0
      %664 = vmatmul.mubr.bf16.gmra.mrb[0].mxu0 %v275
      %v665 = vpop.f32.mrb[0].mxu0
      %v666 = vadd.f32 %v314, %v665
      %v667 = vpop.f32.mrb[0].mxu0
      %v668 = vadd.f32 %v318, %v667
      %v669 = vpop.f32.mrb[0].mxu0
      %v670 = vadd.f32 %v314, %v669
      %v671 = vpop.f32.mrb[0].mxu0
      %v672 = vadd.f32 %v318, %v671
      %673 = vmatprep.mubr.bf16.mxu0 0
      %674 = vmatmul.mubr.bf16.gmra.mrb[0].mxu0 %v276
      %v675 = vpop.f32.mrb[0].mxu0
      %v676 = vadd.f32 %v314, %v675
      %v677 = vpop.f32.mrb[0].mxu0
      %v678 = vadd.f32 %v318, %v677
      %v679 = vpop.f32.mrb[0].mxu0
      %v680 = vadd.f32 %v314, %v679
      %v681 = vpop.f32.mrb[0].mxu0
      %v682 = vadd.f32 %v318, %v681
      %683 = vdwg.mxu0
      %684 = vmatprep.subr.bf16.mxu0 %v430
      %685 = vmatpush1.bf16.msra.mxu0 %v429
      %686 = vmatprep.subr.bf16.mxu0 %v434
      %687 = vmatpush1.bf16.msra.mxu0 %v433
      %688 = vmatprep.subr.bf16.mxu0 %v438
      %689 = vmatpush1.bf16.msra.mxu0 %v437
      %690 = vmatprep.subr.bf16.mxu0 %v442
      %691 = vmatpush1.bf16.msra.mxu0 %v441
      %692 = vmatprep.subr.bf16.mxu0 %v446
      %693 = vmatpush1.bf16.msra.mxu0 %v445
      %694 = vmatprep.subr.bf16.mxu0 %v450
      %695 = vmatpush1.bf16.msra.mxu0 %v449
      %696 = vmatprep.subr.bf16.mxu0 %v454
      %697 = vmatpush1.bf16.msra.mxu0 %v453
      %698 = vmatprep.subr.bf16.mxu0 %v458
      %699 = vmatpush1.bf16.msra.mxu0 %v457
      %700 = vmatprep.subr.bf16.mxu0 0
      %701 = vmatpush1.bf16.msra.mxu0 0
      %702 = vmatprep.subr.bf16.mxu0 0
      %703 = vmatpush1.bf16.msra.mxu0 0
      %704 = vmatprep.subr.bf16.mxu0 0
      %705 = vmatpush1.bf16.msra.mxu0 0
      %706 = vmatprep.subr.bf16.mxu0 0
      %707 = vmatpush1.bf16.msra.mxu0 0
      %708 = vmatprep.subr.bf16.mxu0 0
      %709 = vmatpush1.bf16.msra.mxu0 0
      %710 = vmatprep.subr.bf16.mxu0 0
      %711 = vmatpush1.bf16.msra.mxu0 0
      %712 = vmatprep.subr.bf16.mxu0 0
      %713 = vmatpush1.bf16.msra.mxu0 0
      %714 = vmatprep.subr.bf16.mxu0 0
      %715 = vmatpush1.bf16.msra.mxu0 0
      %716 = vmatprep.mubr.bf16.mxu0 0
      %717 = vmatmul.mubr.bf16.gmra.mrb[0].mxu0 %v261
      %v718 = vpop.f32.mrb[0].mxu0
      %v719 = vadd.f32 %v322, %v718
      %v720 = vpop.f32.mrb[0].mxu0
      %v721 = vadd.f32 %v326, %v720
      %v722 = vpop.f32.mrb[0].mxu0
      %v723 = vadd.f32 %v322, %v722
      %v724 = vpop.f32.mrb[0].mxu0
      %v725 = vadd.f32 %v326, %v724
      %726 = vmatprep.mubr.bf16.mxu0 0
      %727 = vmatmul.mubr.bf16.gmra.mrb[0].mxu0 %v262
      %v728 = vpop.f32.mrb[0].mxu0
      %v729 = vadd.f32 %v322, %v728
      %v730 = vpop.f32.mrb[0].mxu0
      %v731 = vadd.f32 %v326, %v730
      %v732 = vpop.f32.mrb[0].mxu0
      %v733 = vadd.f32 %v322, %v732
      %v734 = vpop.f32.mrb[0].mxu0
      %v735 = vadd.f32 %v326, %v734
      %736 = vmatprep.mubr.bf16.mxu0 0
      %737 = vmatmul.mubr.bf16.gmra.mrb[0].mxu0 %v263
      %v738 = vpop.f32.mrb[0].mxu0
      %v739 = vadd.f32 %v322, %v738
      %v740 = vpop.f32.mrb[0].mxu0
      %v741 = vadd.f32 %v326, %v740
      %v742 = vpop.f32.mrb[0].mxu0
      %v743 = vadd.f32 %v322, %v742
      %v744 = vpop.f32.mrb[0].mxu0
      %v745 = vadd.f32 %v326, %v744
      %746 = vmatprep.mubr.bf16.mxu0 0
      %747 = vmatmul.mubr.bf16.gmra.mrb[0].mxu0 %v264
      %v748 = vpop.f32.mrb[0].mxu0
      %v749 = vadd.f32 %v322, %v748
      %v750 = vpop.f32.mrb[0].mxu0
      %v751 = vadd.f32 %v326, %v750
      %v752 = vpop.f32.mrb[0].mxu0
      %v753 = vadd.f32 %v322, %v752
      %v754 = vpop.f32.mrb[0].mxu0
      %v755 = vadd.f32 %v326, %v754
      %756 = vmatprep.mubr.bf16.mxu0 0
      %757 = vmatmul.mubr.bf16.gmra.mrb[0].mxu0 %v265
      %v758 = vpop.f32.mrb[0].mxu0
      %v759 = vadd.f32 %v322, %v758
      %v760 = vpop.f32.mrb[0].mxu0
      %v761 = vadd.f32 %v326, %v760
      %v762 = vpop.f32.mrb[0].mxu0
      %v763 = vadd.f32 %v322, %v762
      %v764 = vpop.f32.mrb[0].mxu0
      %v765 = vadd.f32 %v326, %v764
      %766 = vmatprep.mubr.bf16.mxu0 0
      %767 = vmatmul.mubr.bf16.gmra.mrb[0].mxu0 %v266
      %v768 = vpop.f32.mrb[0].mxu0
      %v769 = vadd.f32 %v322, %v768
      %v770 = vpop.f32.mrb[0].mxu0
      %v771 = vadd.f32 %v326, %v770
      %v772 = vpop.f32.mrb[0].mxu0
      %v773 = vadd.f32 %v322, %v772
      %v774 = vpop.f32.mrb[0].mxu0
      %v775 = vadd.f32 %v326, %v774
      %776 = vmatprep.mubr.bf16.mxu0 0
      %777 = vmatmul.mubr.bf16.gmra.mrb[0].mxu0 %v267
      %v778 = vpop.f32.mrb[0].mxu0
      %v779 = vadd.f32 %v322, %v778
      %v780 = vpop.f32.mrb[0].mxu0
      %v781 = vadd.f32 %v326, %v780
      %v782 = vpop.f32.mrb[0].mxu0
      %v783 = vadd.f32 %v322, %v782
      %v784 = vpop.f32.mrb[0].mxu0
      %v785 = vadd.f32 %v326, %v784
      %786 = vmatprep.mubr.bf16.mxu0 0
      %787 = vmatmul.mubr.bf16.gmra.mrb[0].mxu0 %v268
      %v788 = vpop.f32.mrb[0].mxu0
      %v789 = vadd.f32 %v322, %v788
      %v790 = vpop.f32.mrb[0].mxu0
      %v791 = vadd.f32 %v326, %v790
      %v792 = vpop.f32.mrb[0].mxu0
      %v793 = vadd.f32 %v322, %v792
      %v794 = vpop.f32.mrb[0].mxu0
      %v795 = vadd.f32 %v326, %v794
      %796 = vmatprep.mubr.bf16.mxu0 0
      %797 = vmatmul.mubr.bf16.gmra.mrb[0].mxu0 %v269
      %v798 = vpop.f32.mrb[0].mxu0
      %v799 = vadd.f32 %v322, %v798
      %v800 = vpop.f32.mrb[0].mxu0
      %v801 = vadd.f32 %v326, %v800
      %v802 = vpop.f32.mrb[0].mxu0
      %v803 = vadd.f32 %v322, %v802
      %v804 = vpop.f32.mrb[0].mxu0
      %v805 = vadd.f32 %v326, %v804
      %806 = vmatprep.mubr.bf16.mxu0 0
      %807 = vmatmul.mubr.bf16.gmra.mrb[0].mxu0 %v270
      %v808 = vpop.f32.mrb[0].mxu0
      %v809 = vadd.f32 %v322, %v808
      %v810 = vpop.f32.mrb[0].mxu0
      %v811 = vadd.f32 %v326, %v810
      %v812 = vpop.f32.mrb[0].mxu0
      %v813 = vadd.f32 %v322, %v812
      %v814 = vpop.f32.mrb[0].mxu0
      %v815 = vadd.f32 %v326, %v814
      %816 = vmatprep.mubr.bf16.mxu0 0
      %817 = vmatmul.mubr.bf16.gmra.mrb[0].mxu0 %v271
      %v818 = vpop.f32.mrb[0].mxu0
      %v819 = vadd.f32 %v322, %v818
      %v820 = vpop.f32.mrb[0].mxu0
      %v821 = vadd.f32 %v326, %v820
      %v822 = vpop.f32.mrb[0].mxu0
      %v823 = vadd.f32 %v322, %v822
      %v824 = vpop.f32.mrb[0].mxu0
      %v825 = vadd.f32 %v326, %v824
      %826 = vmatprep.mubr.bf16.mxu0 0
      %827 = vmatmul.mubr.bf16.gmra.mrb[0].mxu0 %v272
      %v828 = vpop.f32.mrb[0].mxu0
      %v829 = vadd.f32 %v322, %v828
      %v830 = vpop.f32.mrb[0].mxu0
      %v831 = vadd.f32 %v326, %v830
      %v832 = vpop.f32.mrb[0].mxu0
      %v833 = vadd.f32 %v322, %v832
      %v834 = vpop.f32.mrb[0].mxu0
      %v835 = vadd.f32 %v326, %v834
      %836 = vmatprep.mubr.bf16.mxu0 0
      %837 = vmatmul.mubr.bf16.gmra.mrb[0].mxu0 %v273
      %v838 = vpop.f32.mrb[0].mxu0
      %v839 = vadd.f32 %v322, %v838
      %v840 = vpop.f32.mrb[0].mxu0
      %v841 = vadd.f32 %v326, %v840
      %v842 = vpop.f32.mrb[0].mxu0
      %v843 = vadd.f32 %v322, %v842
      %v844 = vpop.f32.mrb[0].mxu0
      %v845 = vadd.f32 %v326, %v844
      %846 = vmatprep.mubr.bf16.mxu0 0
      %847 = vmatmul.mubr.bf16.gmra.mrb[0].mxu0 %v274
      %v848 = vpop.f32.mrb[0].mxu0
      %v849 = vadd.f32 %v322, %v848
      %v850 = vpop.f32.mrb[0].mxu0
      %v851 = vadd.f32 %v326, %v850
      %v852 = vpop.f32.mrb[0].mxu0
      %v853 = vadd.f32 %v322, %v852
      %v854 = vpop.f32.mrb[0].mxu0
      %v855 = vadd.f32 %v326, %v854
      %856 = vmatprep.mubr.bf16.mxu0 0
      %857 = vmatmul.mubr.bf16.gmra.mrb[0].mxu0 %v275
      %v858 = vpop.f32.mrb[0].mxu0
      %v859 = vadd.f32 %v322, %v858
      %v860 = vpop.f32.mrb[0].mxu0
      %v861 = vadd.f32 %v326, %v860
      %v862 = vpop.f32.mrb[0].mxu0
      %v863 = vadd.f32 %v322, %v862
      %v864 = vpop.f32.mrb[0].mxu0
      %v865 = vadd.f32 %v326, %v864
      %866 = vmatprep.mubr.bf16.mxu0 0
      %867 = vmatmul.mubr.bf16.gmra.mrb[0].mxu0 %v276
      %v868 = vpop.f32.mrb[0].mxu0
      %v869 = vadd.f32 %v322, %v868
      %v870 = vpop.f32.mrb[0].mxu0
      %v871 = vadd.f32 %v326, %v870
      %v872 = vpop.f32.mrb[0].mxu0
      %v873 = vadd.f32 %v322, %v872
      %v874 = vpop.f32.mrb[0].mxu0
      %v875 = vadd.f32 %v326, %v874
      %876 = vdwg.mxu0
      %v877 = vmax.f32 %v526, 0.0
      %v878 = vmax.f32 %v528, 0.0
      %v879 = vmax.f32 %v719, 0.0
      %v880 = vmax.f32 %v721, 0.0
      %v881 = vmax.f32 %v530, 0.0
      %v882 = vmax.f32 %v532, 0.0
      %v883 = vmax.f32 %v723, 0.0
      %v884 = vmax.f32 %v725, 0.0
      %v885 = vmax.f32 %v536, 0.0
      %v886 = vmax.f32 %v538, 0.0
      %v887 = vmax.f32 %v729, 0.0
      %v888 = vmax.f32 %v731, 0.0
      %v889 = vmax.f32 %v540, 0.0
      %v890 = vmax.f32 %v542, 0.0
      %v891 = vmax.f32 %v733, 0.0
      %v892 = vmax.f32 %v735, 0.0
      %v893 = vmax.f32 %v546, 0.0
      %v894 = vmax.f32 %v548, 0.0
      %v895 = vmax.f32 %v739, 0.0
      %v896 = vmax.f32 %v741, 0.0
      %v897 = vmax.f32 %v550, 0.0
      %v898 = vmax.f32 %v552, 0.0
      %v899 = vmax.f32 %v743, 0.0
      %v900 = vmax.f32 %v745, 0.0
      %v901 = vmax.f32 %v556, 0.0
      %v902 = vmax.f32 %v558, 0.0
      %v903 = vmax.f32 %v749, 0.0
      %v904 = vmax.f32 %v751, 0.0
      %v905 = vmax.f32 %v560, 0.0
      %v906 = vmax.f32 %v562, 0.0
      %v907 = vmax.f32 %v753, 0.0
      %v908 = vmax.f32 %v755, 0.0
      %v909 = vmax.f32 %v566, 0.0
      %v910 = vmax.f32 %v568, 0.0
      %v911 = vmax.f32 %v759, 0.0
      %v912 = vmax.f32 %v761, 0.0
      %v913 = vmax.f32 %v570, 0.0
      %v914 = vmax.f32 %v572, 0.0
      %v915 = vmax.f32 %v763, 0.0
      %v916 = vmax.f32 %v765, 0.0
      %v917 = vmax.f32 %v576, 0.0
      %v918 = vmax.f32 %v578, 0.0
      %v919 = vmax.f32 %v769, 0.0
      %v920 = vmax.f32 %v771, 0.0
      %v921 = vmax.f32 %v580, 0.0
      %v922 = vmax.f32 %v582, 0.0
      %v923 = vmax.f32 %v773, 0.0
      %v924 = vmax.f32 %v775, 0.0
      %v925 = vmax.f32 %v586, 0.0
      %v926 = vmax.f32 %v588, 0.0
      %v927 = vmax.f32 %v779, 0.0
      %v928 = vmax.f32 %v781, 0.0
      %v929 = vmax.f32 %v590, 0.0
      %v930 = vmax.f32 %v592, 0.0
      %v931 = vmax.f32 %v783, 0.0
      %v932 = vmax.f32 %v785, 0.0
      %v933 = vmax.f32 %v596, 0.0
      %v934 = vmax.f32 %v598, 0.0
      %v935 = vmax.f32 %v789, 0.0
      %v936 = vmax.f32 %v791, 0.0
      %v937 = vmax.f32 %v600, 0.0
      %v938 = vmax.f32 %v602, 0.0
      %v939 = vmax.f32 %v793, 0.0
      %v940 = vmax.f32 %v795, 0.0
      %v941 = vmax.f32 %v606, 0.0
      %v942 = vmax.f32 %v608, 0.0
      %v943 = vmax.f32 %v799, 0.0
      %v944 = vmax.f32 %v801, 0.0
      %v945 = vmax.f32 %v610, 0.0
      %v946 = vmax.f32 %v612, 0.0
      %v947 = vmax.f32 %v803, 0.0
      %v948 = vmax.f32 %v805, 0.0
      %v949 = vmax.f32 %v616, 0.0
      %v950 = vmax.f32 %v618, 0.0
      %v951 = vmax.f32 %v809, 0.0
      %v952 = vmax.f32 %v811, 0.0
      %v953 = vmax.f32 %v620, 0.0
      %v954 = vmax.f32 %v622, 0.0
      %v955 = vmax.f32 %v813, 0.0
      %v956 = vmax.f32 %v815, 0.0
      %v957 = vmax.f32 %v626, 0.0
      %v958 = vmax.f32 %v628, 0.0
      %v959 = vmax.f32 %v819, 0.0
      %v960 = vmax.f32 %v821, 0.0
      %v961 = vmax.f32 %v630, 0.0
      %v962 = vmax.f32 %v632, 0.0
      %v963 = vmax.f32 %v823, 0.0
      %v964 = vmax.f32 %v825, 0.0
      %v965 = vmax.f32 %v636, 0.0
      %v966 = vmax.f32 %v638, 0.0
      %v967 = vmax.f32 %v829, 0.0
      %v968 = vmax.f32 %v831, 0.0
      %v969 = vmax.f32 %v640, 0.0
      %v970 = vmax.f32 %v642, 0.0
      %v971 = vmax.f32 %v833, 0.0
      %v972 = vmax.f32 %v835, 0.0
      %v973 = vmax.f32 %v646, 0.0
      %v974 = vmax.f32 %v648, 0.0
      %v975 = vmax.f32 %v839, 0.0
      %v976 = vmax.f32 %v841, 0.0
      %v977 = vmax.f32 %v650, 0.0
      %v978 = vmax.f32 %v652, 0.0
      %v979 = vmax.f32 %v843, 0.0
      %v980 = vmax.f32 %v845, 0.0
      %v981 = vmax.f32 %v656, 0.0
      %v982 = vmax.f32 %v658, 0.0
      %v983 = vmax.f32 %v849, 0.0
      %v984 = vmax.f32 %v851, 0.0
      %v985 = vmax.f32 %v660, 0.0
      %v986 = vmax.f32 %v662, 0.0
      %v987 = vmax.f32 %v853, 0.0
      %v988 = vmax.f32 %v855, 0.0
      %v989 = vmax.f32 %v666, 0.0
      %v990 = vmax.f32 %v668, 0.0
      %v991 = vmax.f32 %v859, 0.0
      %v992 = vmax.f32 %v861, 0.0
      %v993 = vmax.f32 %v670, 0.0
      %v994 = vmax.f32 %v672, 0.0
      %v995 = vmax.f32 %v863, 0.0
      %v996 = vmax.f32 %v865, 0.0
      %v997 = vmax.f32 %v676, 0.0
      %v998 = vmax.f32 %v678, 0.0
      %v999 = vmax.f32 %v869, 0.0
      %v1000 = vmax.f32 %v871, 0.0
      %v1001 = vmax.f32 %v680, 0.0
      %v1002 = vmax.f32 %v682, 0.0
      %v1003 = vmax.f32 %v873, 0.0
      %v1004 = vmax.f32 %v875, 0.0
      %v1005 = vpack.c.bf16 %v881, %v877
      %v1006 = vpack.c.bf16 %v882, %v878
      %v1007 = vpack.c.bf16 %v883, %v879
      %v1008 = vpack.c.bf16 %v884, %v880
      %v1009 = vpack.c.bf16 %v889, %v885
      %v1010 = vpack.c.bf16 %v890, %v886
      %v1011 = vpack.c.bf16 %v891, %v887
      %v1012 = vpack.c.bf16 %v892, %v888
      %v1013 = vpack.c.bf16 %v897, %v893
      %v1014 = vpack.c.bf16 %v898, %v894
      %v1015 = vpack.c.bf16 %v899, %v895
      %v1016 = vpack.c.bf16 %v900, %v896
      %v1017 = vpack.c.bf16 %v905, %v901
      %v1018 = vpack.c.bf16 %v906, %v902
      %v1019 = vpack.c.bf16 %v907, %v903
      %v1020 = vpack.c.bf16 %v908, %v904
      %v1021 = vpack.c.bf16 %v913, %v909
      %v1022 = vpack.c.bf16 %v914, %v910
      %v1023 = vpack.c.bf16 %v915, %v911
      %v1024 = vpack.c.bf16 %v916, %v912
      %v1025 = vpack.c.bf16 %v921, %v917
      %v1026 = vpack.c.bf16 %v922, %v918
      %v1027 = vpack.c.bf16 %v923, %v919
      %v1028 = vpack.c.bf16 %v924, %v920
      %v1029 = vpack.c.bf16 %v929, %v925
      %v1030 = vpack.c.bf16 %v930, %v926
      %v1031 = vpack.c.bf16 %v931, %v927
      %v1032 = vpack.c.bf16 %v932, %v928
      %v1033 = vpack.c.bf16 %v937, %v933
      %v1034 = vpack.c.bf16 %v938, %v934
      %v1035 = vpack.c.bf16 %v939, %v935
      %v1036 = vpack.c.bf16 %v940, %v936
      %v1037 = vpack.c.bf16 %v945, %v941
      %v1038 = vpack.c.bf16 %v946, %v942
      %v1039 = vpack.c.bf16 %v947, %v943
      %v1040 = vpack.c.bf16 %v948, %v944
      %v1041 = vpack.c.bf16 %v953, %v949
      %v1042 = vpack.c.bf16 %v954, %v950
      %v1043 = vpack.c.bf16 %v955, %v951
      %v1044 = vpack.c.bf16 %v956, %v952
      %v1045 = vpack.c.bf16 %v961, %v957
      %v1046 = vpack.c.bf16 %v962, %v958
      %v1047 = vpack.c.bf16 %v963, %v959
      %v1048 = vpack.c.bf16 %v964, %v960
      %v1049 = vpack.c.bf16 %v969, %v965
      %v1050 = vpack.c.bf16 %v970, %v966
      %v1051 = vpack.c.bf16 %v971, %v967
      %v1052 = vpack.c.bf16 %v972, %v968
      %v1053 = vpack.c.bf16 %v977, %v973
      %v1054 = vpack.c.bf16 %v978, %v974
      %v1055 = vpack.c.bf16 %v979, %v975
      %v1056 = vpack.c.bf16 %v980, %v976
      %v1057 = vpack.c.bf16 %v985, %v981
      %v1058 = vpack.c.bf16 %v986, %v982
      %v1059 = vpack.c.bf16 %v987, %v983
      %v1060 = vpack.c.bf16 %v988, %v984
      %v1061 = vpack.c.bf16 %v993, %v989
      %v1062 = vpack.c.bf16 %v994, %v990
      %v1063 = vpack.c.bf16 %v995, %v991
      %v1064 = vpack.c.bf16 %v996, %v992
      %v1065 = vpack.c.bf16 %v1001, %v997
      %v1066 = vpack.c.bf16 %v1002, %v998
      %v1067 = vpack.c.bf16 %v1003, %v999
      %v1068 = vpack.c.bf16 %v1004, %v1000
      %v1069 = vld [vmem:[%s3] sm:$0xf]
      %v1070 = vld [vmem:[%s3 + $0x4] sm:$0xf]
      %v1071 = vld [vmem:[%s3 + $0x8] sm:$0xf]
      %v1072 = vld [vmem:[%s3 + $0xc] sm:$0xf]
      %v1073 = vld [vmem:[%s3 + $0x10] sm:$0xf]
      %v1074 = vld [vmem:[%s3 + $0x14] sm:$0xf]
      %v1075 = vld [vmem:[%s3 + $0x18] sm:$0xf]
      %v1076 = vld [vmem:[%s3 + $0x1c] sm:$0xf]
      %v1077 = vld [vmem:[%s3 + $0x20] sm:$0xf]
      %v1078 = vld [vmem:[%s3 + $0x24] sm:$0xf]
      %v1079 = vld [vmem:[%s3 + $0x28] sm:$0xf]
      %v1080 = vld [vmem:[%s3 + $0x2c] sm:$0xf]
      %v1081 = vld [vmem:[%s3 + $0x30] sm:$0xf]
      %v1082 = vld [vmem:[%s3 + $0x34] sm:$0xf]
      %v1083 = vld [vmem:[%s3 + $0x38] sm:$0xf]
      %v1084 = vld [vmem:[%s3 + $0x3c] sm:$0xf]
      %v1085 = vld [vmem:[%s3 + $0x40] sm:$0xf]
      %v1086 = vld [vmem:[%s3 + $0x44] sm:$0xf]
      %v1087 = vld [vmem:[%s3 + $0x48] sm:$0xf]
      %v1088 = vld [vmem:[%s3 + $0x4c] sm:$0xf]
      %v1089 = vld [vmem:[%s3 + $0x50] sm:$0xf]
      %v1090 = vld [vmem:[%s3 + $0x54] sm:$0xf]
      %v1091 = vld [vmem:[%s3 + $0x58] sm:$0xf]
      %v1092 = vld [vmem:[%s3 + $0x5c] sm:$0xf]
      %v1093 = vld [vmem:[%s3 + $0x60] sm:$0xf]
      %v1094 = vld [vmem:[%s3 + $0x64] sm:$0xf]
      %v1095 = vld [vmem:[%s3 + $0x68] sm:$0xf]
      %v1096 = vld [vmem:[%s3 + $0x6c] sm:$0xf]
      %v1097 = vld [vmem:[%s3 + $0x70] sm:$0xf]
      %v1098 = vld [vmem:[%s3 + $0x74] sm:$0xf]
      %v1099 = vld [vmem:[%s3 + $0x78] sm:$0xf]
      %v1100 = vld [vmem:[%s3 + $0x7c] sm:$0xf]
      %v1101 = vld [vmem:[%s3 + $0x80] sm:$0xf]
      %v1102 = vld [vmem:[%s3 + $0x84] sm:$0xf]
      %v1103 = vld [vmem:[%s3 + $0x88] sm:$0xf]
      %v1104 = vld [vmem:[%s3 + $0x8c] sm:$0xf]
      %v1105 = vld [vmem:[%s3 + $0x90] sm:$0xf]
      %v1106 = vld [vmem:[%s3 + $0x94] sm:$0xf]
      %v1107 = vld [vmem:[%s3 + $0x98] sm:$0xf]
      %v1108 = vld [vmem:[%s3 + $0x9c] sm:$0xf]
      %v1109 = vld [vmem:[%s3 + $0xa0] sm:$0xf]
      %v1110 = vld [vmem:[%s3 + $0xa4] sm:$0xf]
      %v1111 = vld [vmem:[%s3 + $0xa8] sm:$0xf]
      %v1112 = vld [vmem:[%s3 + $0xac] sm:$0xf]
      %v1113 = vld [vmem:[%s3 + $0xb0] sm:$0xf]
      %v1114 = vld [vmem:[%s3 + $0xb4] sm:$0xf]
      %v1115 = vld [vmem:[%s3 + $0xb8] sm:$0xf]
      %v1116 = vld [vmem:[%s3 + $0xbc] sm:$0xf]
      %v1117 = vld [vmem:[%s3 + $0xc0] sm:$0xf]
      %v1118 = vld [vmem:[%s3 + $0xc4] sm:$0xf]
      %v1119 = vld [vmem:[%s3 + $0xc8] sm:$0xf]
      %v1120 = vld [vmem:[%s3 + $0xcc] sm:$0xf]
      %v1121 = vld [vmem:[%s3 + $0xd0] sm:$0xf]
      %v1122 = vld [vmem:[%s3 + $0xd4] sm:$0xf]
      %v1123 = vld [vmem:[%s3 + $0xd8] sm:$0xf]
      %v1124 = vld [vmem:[%s3 + $0xdc] sm:$0xf]
      %v1125 = vld [vmem:[%s3 + $0xe0] sm:$0xf]
      %v1126 = vld [vmem:[%s3 + $0xe4] sm:$0xf]
      %v1127 = vld [vmem:[%s3 + $0xe8] sm:$0xf]
      %v1128 = vld [vmem:[%s3 + $0xec] sm:$0xf]
      %v1129 = vld [vmem:[%s3 + $0xf0] sm:$0xf]
      %v1130 = vld [vmem:[%s3 + $0xf4] sm:$0xf]
      %v1131 = vld [vmem:[%s3 + $0xf8] sm:$0xf]
      %v1132 = vld [vmem:[%s3 + $0xfc] sm:$0xf]
      %v1133 = vld [vmem:[%s1 + $0x10] sm:$0xff]
      %v1134 = vld [vmem:[%s1 + $0x18] sm:$0xff]
      %v1135 = vld [vmem:[%s1 + $0x30] sm:$0xff]
      %v1136 = vld [vmem:[%s1 + $0x38] sm:$0xff]
      %v1137 = vld [vmem:[%s1 + $0x50] sm:$0xff]
      %v1138 = vld [vmem:[%s1 + $0x58] sm:$0xff]
      %v1139 = vld [vmem:[%s1 + $0x70] sm:$0xff]
      %v1140 = vld [vmem:[%s1 + $0x78] sm:$0xff]
      %v1141 = vld [vmem:[%s1 + $0x90] sm:$0xff]
      %v1142 = vld [vmem:[%s1 + $0x98] sm:$0xff]
      %v1143 = vld [vmem:[%s1 + $0xb0] sm:$0xff]
      %v1144 = vld [vmem:[%s1 + $0xb8] sm:$0xff]
      %v1145 = vld [vmem:[%s1 + $0xd0] sm:$0xff]
      %v1146 = vld [vmem:[%s1 + $0xd8] sm:$0xff]
      %v1147 = vld [vmem:[%s1 + $0xf0] sm:$0xff]
      %v1148 = vld [vmem:[%s1 + $0xf8] sm:$0xff]
      %v1149 = vld [vmem:[%s1 + $0x110] sm:$0xff]
      %v1150 = vld [vmem:[%s1 + $0x118] sm:$0xff]
      %v1151 = vld [vmem:[%s1 + $0x130] sm:$0xff]
      %v1152 = vld [vmem:[%s1 + $0x138] sm:$0xff]
      %v1153 = vld [vmem:[%s1 + $0x150] sm:$0xff]
      %v1154 = vld [vmem:[%s1 + $0x158] sm:$0xff]
      %v1155 = vld [vmem:[%s1 + $0x170] sm:$0xff]
      %v1156 = vld [vmem:[%s1 + $0x178] sm:$0xff]
      %v1157 = vld [vmem:[%s1 + $0x190] sm:$0xff]
      %v1158 = vld [vmem:[%s1 + $0x198] sm:$0xff]
      %v1159 = vld [vmem:[%s1 + $0x1b0] sm:$0xff]
      %v1160 = vld [vmem:[%s1 + $0x1b8] sm:$0xff]
      %v1161 = vld [vmem:[%s1 + $0x1d0] sm:$0xff]
      %v1162 = vld [vmem:[%s1 + $0x1d8] sm:$0xff]
      %v1163 = vld [vmem:[%s1 + $0x1f0] sm:$0xff]
      %v1164 = vld [vmem:[%s1 + $0x1f8] sm:$0xff]
      %v1165 = vld [vmem:[%s2 + $0x4] sm:$0xf]
      %v1167 = vlaneseq
      %v1168 = vshrl.u32 %v1167, 7
      %v1169 = vsub.s32 0, %v1168
      %v1170 = vrot.slane %v1165, %v1169
      %v1171 = vlaneseq
      %v1172 = vshrl.u32 %v1171, 7
      %v1173 = vsub.s32 1, %v1172
      %v1174 = vrot.slane %v1165, %v1173
      %v1175 = vlaneseq
      %v1176 = vshrl.u32 %v1175, 7
      %v1177 = vsub.s32 2, %v1176
      %v1178 = vrot.slane %v1165, %v1177
      %v1179 = vlaneseq
      %v1180 = vshrl.u32 %v1179, 7
      %v1181 = vsub.s32 3, %v1180
      %v1182 = vrot.slane %v1165, %v1181
      %v1219 = vunpack.c.l.b16 %v1133
      %v1220 = vunpack.c.h.b16 %v1133
      %v1221 = vunpack.c.l.b16 %v1134
      %v1222 = vunpack.c.h.b16 %v1134
      %v1223 = vunpack.c.l.b16 %v1135
      %v1224 = vunpack.c.h.b16 %v1135
      %v1225 = vunpack.c.l.b16 %v1136
      %v1226 = vunpack.c.h.b16 %v1136
      %v1227 = vunpack.c.l.b16 %v1137
      %v1228 = vunpack.c.h.b16 %v1137
      %v1229 = vunpack.c.l.b16 %v1138
      %v1230 = vunpack.c.h.b16 %v1138
      %v1231 = vunpack.c.l.b16 %v1139
      %v1232 = vunpack.c.h.b16 %v1139
      %v1233 = vunpack.c.l.b16 %v1140
      %v1234 = vunpack.c.h.b16 %v1140
      %v1235 = vunpack.c.l.b16 %v1141
      %v1236 = vunpack.c.h.b16 %v1141
      %v1237 = vunpack.c.l.b16 %v1142
      %v1238 = vunpack.c.h.b16 %v1142
      %v1239 = vunpack.c.l.b16 %v1143
      %v1240 = vunpack.c.h.b16 %v1143
      %v1241 = vunpack.c.l.b16 %v1144
      %v1242 = vunpack.c.h.b16 %v1144
      %v1243 = vunpack.c.l.b16 %v1145
      %v1244 = vunpack.c.h.b16 %v1145
      %v1245 = vunpack.c.l.b16 %v1146
      %v1246 = vunpack.c.h.b16 %v1146
      %v1247 = vunpack.c.l.b16 %v1147
      %v1248 = vunpack.c.h.b16 %v1147
      %v1249 = vunpack.c.l.b16 %v1148
      %v1250 = vunpack.c.h.b16 %v1148
      %v1251 = vunpack.c.l.b16 %v1149
      %v1252 = vunpack.c.h.b16 %v1149
      %v1253 = vunpack.c.l.b16 %v1150
      %v1254 = vunpack.c.h.b16 %v1150
      %v1255 = vunpack.c.l.b16 %v1151
      %v1256 = vunpack.c.h.b16 %v1151
      %v1257 = vunpack.c.l.b16 %v1152
      %v1258 = vunpack.c.h.b16 %v1152
      %v1259 = vunpack.c.l.b16 %v1153
      %v1260 = vunpack.c.h.b16 %v1153
      %v1261 = vunpack.c.l.b16 %v1154
      %v1262 = vunpack.c.h.b16 %v1154
      %v1263 = vunpack.c.l.b16 %v1155
      %v1264 = vunpack.c.h.b16 %v1155
      %v1265 = vunpack.c.l.b16 %v1156
      %v1266 = vunpack.c.h.b16 %v1156
      %v1267 = vunpack.c.l.b16 %v1157
      %v1268 = vunpack.c.h.b16 %v1157
      %v1269 = vunpack.c.l.b16 %v1158
      %v1270 = vunpack.c.h.b16 %v1158
      %v1271 = vunpack.c.l.b16 %v1159
      %v1272 = vunpack.c.h.b16 %v1159
      %v1273 = vunpack.c.l.b16 %v1160
      %v1274 = vunpack.c.h.b16 %v1160
      %v1275 = vunpack.c.l.b16 %v1161
      %v1276 = vunpack.c.h.b16 %v1161
      %v1277 = vunpack.c.l.b16 %v1162
      %v1278 = vunpack.c.h.b16 %v1162
      %v1279 = vunpack.c.l.b16 %v1163
      %v1280 = vunpack.c.h.b16 %v1163
      %v1281 = vunpack.c.l.b16 %v1164
      %v1282 = vunpack.c.h.b16 %v1164
      %v1283 = vpack.c.b16 %v1223, %v1219
      %v1284 = vpack.c.b16 %v1224, %v1220
      %v1285 = vpack.c.b16 %v1225, %v1221
      %v1286 = vpack.c.b16 %v1226, %v1222
      %v1287 = vpack.c.b16 %v1231, %v1227
      %v1288 = vpack.c.b16 %v1232, %v1228
      %v1289 = vpack.c.b16 %v1233, %v1229
      %v1290 = vpack.c.b16 %v1234, %v1230
      %v1291 = vpack.c.b16 %v1239, %v1235
      %v1292 = vpack.c.b16 %v1240, %v1236
      %v1293 = vpack.c.b16 %v1241, %v1237
      %v1294 = vpack.c.b16 %v1242, %v1238
      %v1295 = vpack.c.b16 %v1247, %v1243
      %v1296 = vpack.c.b16 %v1248, %v1244
      %v1297 = vpack.c.b16 %v1249, %v1245
      %v1298 = vpack.c.b16 %v1250, %v1246
      %v1299 = vpack.c.b16 %v1255, %v1251
      %v1300 = vpack.c.b16 %v1256, %v1252
      %v1301 = vpack.c.b16 %v1257, %v1253
      %v1302 = vpack.c.b16 %v1258, %v1254
      %v1303 = vpack.c.b16 %v1263, %v1259
      %v1304 = vpack.c.b16 %v1264, %v1260
      %v1305 = vpack.c.b16 %v1265, %v1261
      %v1306 = vpack.c.b16 %v1266, %v1262
      %v1307 = vpack.c.b16 %v1271, %v1267
      %v1308 = vpack.c.b16 %v1272, %v1268
      %v1309 = vpack.c.b16 %v1273, %v1269
      %v1310 = vpack.c.b16 %v1274, %v1270
      %v1311 = vpack.c.b16 %v1279, %v1275
      %v1312 = vpack.c.b16 %v1280, %v1276
      %v1313 = vpack.c.b16 %v1281, %v1277
      %v1314 = vpack.c.b16 %v1282, %v1278
      %1347 = vmatprep.subr.bf16.mxu0 %v1284
      %1348 = vmatpush1.bf16.msra.mxu0 %v1283
      %1349 = vmatprep.subr.bf16.mxu0 %v1288
      %1350 = vmatpush1.bf16.msra.mxu0 %v1287
      %1351 = vmatprep.subr.bf16.mxu0 %v1292
      %1352 = vmatpush1.bf16.msra.mxu0 %v1291
      %1353 = vmatprep.subr.bf16.mxu0 %v1296
      %1354 = vmatpush1.bf16.msra.mxu0 %v1295
      %1355 = vmatprep.subr.bf16.mxu0 %v1300
      %1356 = vmatpush1.bf16.msra.mxu0 %v1299
      %1357 = vmatprep.subr.bf16.mxu0 %v1304
      %1358 = vmatpush1.bf16.msra.mxu0 %v1303
      %1359 = vmatprep.subr.bf16.mxu0 %v1308
      %1360 = vmatpush1.bf16.msra.mxu0 %v1307
      %1361 = vmatprep.subr.bf16.mxu0 %v1312
      %1362 = vmatpush1.bf16.msra.mxu0 %v1311
      %1363 = vmatprep.subr.bf16.mxu0 0
      %1364 = vmatpush1.bf16.msra.mxu0 0
      %1365 = vmatprep.subr.bf16.mxu0 0
      %1366 = vmatpush1.bf16.msra.mxu0 0
      %1367 = vmatprep.subr.bf16.mxu0 0
      %1368 = vmatpush1.bf16.msra.mxu0 0
      %1369 = vmatprep.subr.bf16.mxu0 0
      %1370 = vmatpush1.bf16.msra.mxu0 0
      %1371 = vmatprep.subr.bf16.mxu0 0
      %1372 = vmatpush1.bf16.msra.mxu0 0
      %1373 = vmatprep.subr.bf16.mxu0 0
      %1374 = vmatpush1.bf16.msra.mxu0 0
      %1375 = vmatprep.subr.bf16.mxu0 0
      %1376 = vmatpush1.bf16.msra.mxu0 0
      %1377 = vmatprep.subr.bf16.mxu0 0
      %1378 = vmatpush1.bf16.msra.mxu0 0
      %1379 = vmatprep.mubr.bf16.mxu0 0
      %1380 = vmatmul.mubr.bf16.gmra.mrb[0].mxu0 %v261
      %v1381 = vpop.f32.mrb[0].mxu0
      %v1382 = vadd.f32 %v1170, %v1381
      %v1383 = vpop.f32.mrb[0].mxu0
      %v1384 = vadd.f32 %v1174, %v1383
      %v1385 = vpop.f32.mrb[0].mxu0
      %v1386 = vadd.f32 %v1170, %v1385
      %v1387 = vpop.f32.mrb[0].mxu0
      %v1388 = vadd.f32 %v1174, %v1387
      %1389 = vmatprep.mubr.bf16.mxu0 0
      %1390 = vmatmul.mubr.bf16.gmra.mrb[0].mxu0 %v262
      %v1391 = vpop.f32.mrb[0].mxu0
      %v1392 = vadd.f32 %v1170, %v1391
      %v1393 = vpop.f32.mrb[0].mxu0
      %v1394 = vadd.f32 %v1174, %v1393
      %v1395 = vpop.f32.mrb[0].mxu0
      %v1396 = vadd.f32 %v1170, %v1395
      %v1397 = vpop.f32.mrb[0].mxu0
      %v1398 = vadd.f32 %v1174, %v1397
      %1399 = vmatprep.mubr.bf16.mxu0 0
      %1400 = vmatmul.mubr.bf16.gmra.mrb[0].mxu0 %v263
      %v1401 = vpop.f32.mrb[0].mxu0
      %v1402 = vadd.f32 %v1170, %v1401
      %v1403 = vpop.f32.mrb[0].mxu0
      %v1404 = vadd.f32 %v1174, %v1403
      %v1405 = vpop.f32.mrb[0].mxu0
      %v1406 = vadd.f32 %v1170, %v1405
      %v1407 = vpop.f32.mrb[0].mxu0
      %v1408 = vadd.f32 %v1174, %v1407
      %1409 = vmatprep.mubr.bf16.mxu0 0
      %1410 = vmatmul.mubr.bf16.gmra.mrb[0].mxu0 %v264
      %v1411 = vpop.f32.mrb[0].mxu0
      %v1412 = vadd.f32 %v1170, %v1411
      %v1413 = vpop.f32.mrb[0].mxu0
      %v1414 = vadd.f32 %v1174, %v1413
      %v1415 = vpop.f32.mrb[0].mxu0
      %v1416 = vadd.f32 %v1170, %v1415
      %v1417 = vpop.f32.mrb[0].mxu0
      %v1418 = vadd.f32 %v1174, %v1417
      %1419 = vmatprep.mubr.bf16.mxu0 0
      %1420 = vmatmul.mubr.bf16.gmra.mrb[0].mxu0 %v265
      %v1421 = vpop.f32.mrb[0].mxu0
      %v1422 = vadd.f32 %v1170, %v1421
      %v1423 = vpop.f32.mrb[0].mxu0
      %v1424 = vadd.f32 %v1174, %v1423
      %v1425 = vpop.f32.mrb[0].mxu0
      %v1426 = vadd.f32 %v1170, %v1425
      %v1427 = vpop.f32.mrb[0].mxu0
      %v1428 = vadd.f32 %v1174, %v1427
      %1429 = vmatprep.mubr.bf16.mxu0 0
      %1430 = vmatmul.mubr.bf16.gmra.mrb[0].mxu0 %v266
      %v1431 = vpop.f32.mrb[0].mxu0
      %v1432 = vadd.f32 %v1170, %v1431
      %v1433 = vpop.f32.mrb[0].mxu0
      %v1434 = vadd.f32 %v1174, %v1433
      %v1435 = vpop.f32.mrb[0].mxu0
      %v1436 = vadd.f32 %v1170, %v1435
      %v1437 = vpop.f32.mrb[0].mxu0
      %v1438 = vadd.f32 %v1174, %v1437
      %1439 = vmatprep.mubr.bf16.mxu0 0
      %1440 = vmatmul.mubr.bf16.gmra.mrb[0].mxu0 %v267
      %v1441 = vpop.f32.mrb[0].mxu0
      %v1442 = vadd.f32 %v1170, %v1441
      %v1443 = vpop.f32.mrb[0].mxu0
      %v1444 = vadd.f32 %v1174, %v1443
      %v1445 = vpop.f32.mrb[0].mxu0
      %v1446 = vadd.f32 %v1170, %v1445
      %v1447 = vpop.f32.mrb[0].mxu0
      %v1448 = vadd.f32 %v1174, %v1447
      %1449 = vmatprep.mubr.bf16.mxu0 0
      %1450 = vmatmul.mubr.bf16.gmra.mrb[0].mxu0 %v268
      %v1451 = vpop.f32.mrb[0].mxu0
      %v1452 = vadd.f32 %v1170, %v1451
      %v1453 = vpop.f32.mrb[0].mxu0
      %v1454 = vadd.f32 %v1174, %v1453
      %v1455 = vpop.f32.mrb[0].mxu0
      %v1456 = vadd.f32 %v1170, %v1455
      %v1457 = vpop.f32.mrb[0].mxu0
      %v1458 = vadd.f32 %v1174, %v1457
      %1459 = vmatprep.mubr.bf16.mxu0 0
      %1460 = vmatmul.mubr.bf16.gmra.mrb[0].mxu0 %v269
      %v1461 = vpop.f32.mrb[0].mxu0
      %v1462 = vadd.f32 %v1170, %v1461
      %v1463 = vpop.f32.mrb[0].mxu0
      %v1464 = vadd.f32 %v1174, %v1463
      %v1465 = vpop.f32.mrb[0].mxu0
      %v1466 = vadd.f32 %v1170, %v1465
      %v1467 = vpop.f32.mrb[0].mxu0
      %v1468 = vadd.f32 %v1174, %v1467
      %1469 = vmatprep.mubr.bf16.mxu0 0
      %1470 = vmatmul.mubr.bf16.gmra.mrb[0].mxu0 %v270
      %v1471 = vpop.f32.mrb[0].mxu0
      %v1472 = vadd.f32 %v1170, %v1471
      %v1473 = vpop.f32.mrb[0].mxu0
      %v1474 = vadd.f32 %v1174, %v1473
      %v1475 = vpop.f32.mrb[0].mxu0
      %v1476 = vadd.f32 %v1170, %v1475
      %v1477 = vpop.f32.mrb[0].mxu0
      %v1478 = vadd.f32 %v1174, %v1477
      %1479 = vmatprep.mubr.bf16.mxu0 0
      %1480 = vmatmul.mubr.bf16.gmra.mrb[0].mxu0 %v271
      %v1481 = vpop.f32.mrb[0].mxu0
      %v1482 = vadd.f32 %v1170, %v1481
      %v1483 = vpop.f32.mrb[0].mxu0
      %v1484 = vadd.f32 %v1174, %v1483
      %v1485 = vpop.f32.mrb[0].mxu0
      %v1486 = vadd.f32 %v1170, %v1485
      %v1487 = vpop.f32.mrb[0].mxu0
      %v1488 = vadd.f32 %v1174, %v1487
      %1489 = vmatprep.mubr.bf16.mxu0 0
      %1490 = vmatmul.mubr.bf16.gmra.mrb[0].mxu0 %v272
      %v1491 = vpop.f32.mrb[0].mxu0
      %v1492 = vadd.f32 %v1170, %v1491
      %v1493 = vpop.f32.mrb[0].mxu0
      %v1494 = vadd.f32 %v1174, %v1493
      %v1495 = vpop.f32.mrb[0].mxu0
      %v1496 = vadd.f32 %v1170, %v1495
      %v1497 = vpop.f32.mrb[0].mxu0
      %v1498 = vadd.f32 %v1174, %v1497
      %1499 = vmatprep.mubr.bf16.mxu0 0
      %1500 = vmatmul.mubr.bf16.gmra.mrb[0].mxu0 %v273
      %v1501 = vpop.f32.mrb[0].mxu0
      %v1502 = vadd.f32 %v1170, %v1501
      %v1503 = vpop.f32.mrb[0].mxu0
      %v1504 = vadd.f32 %v1174, %v1503
      %v1505 = vpop.f32.mrb[0].mxu0
      %v1506 = vadd.f32 %v1170, %v1505
      %v1507 = vpop.f32.mrb[0].mxu0
      %v1508 = vadd.f32 %v1174, %v1507
      %1509 = vmatprep.mubr.bf16.mxu0 0
      %1510 = vmatmul.mubr.bf16.gmra.mrb[0].mxu0 %v274
      %v1511 = vpop.f32.mrb[0].mxu0
      %v1512 = vadd.f32 %v1170, %v1511
      %v1513 = vpop.f32.mrb[0].mxu0
      %v1514 = vadd.f32 %v1174, %v1513
      %v1515 = vpop.f32.mrb[0].mxu0
      %v1516 = vadd.f32 %v1170, %v1515
      %v1517 = vpop.f32.mrb[0].mxu0
      %v1518 = vadd.f32 %v1174, %v1517
      %1519 = vmatprep.mubr.bf16.mxu0 0
      %1520 = vmatmul.mubr.bf16.gmra.mrb[0].mxu0 %v275
      %v1521 = vpop.f32.mrb[0].mxu0
      %v1522 = vadd.f32 %v1170, %v1521
      %v1523 = vpop.f32.mrb[0].mxu0
      %v1524 = vadd.f32 %v1174, %v1523
      %v1525 = vpop.f32.mrb[0].mxu0
      %v1526 = vadd.f32 %v1170, %v1525
      %v1527 = vpop.f32.mrb[0].mxu0
      %v1528 = vadd.f32 %v1174, %v1527
      %1529 = vmatprep.mubr.bf16.mxu0 0
      %1530 = vmatmul.mubr.bf16.gmra.mrb[0].mxu0 %v276
      %v1531 = vpop.f32.mrb[0].mxu0
      %v1532 = vadd.f32 %v1170, %v1531
      %v1533 = vpop.f32.mrb[0].mxu0
      %v1534 = vadd.f32 %v1174, %v1533
      %v1535 = vpop.f32.mrb[0].mxu0
      %v1536 = vadd.f32 %v1170, %v1535
      %v1537 = vpop.f32.mrb[0].mxu0
      %v1538 = vadd.f32 %v1174, %v1537
      %1539 = vdwg.mxu0
      %1540 = vmatprep.subr.bf16.mxu0 %v1286
      %1541 = vmatpush1.bf16.msra.mxu0 %v1285
      %1542 = vmatprep.subr.bf16.mxu0 %v1290
      %1543 = vmatpush1.bf16.msra.mxu0 %v1289
      %1544 = vmatprep.subr.bf16.mxu0 %v1294
      %1545 = vmatpush1.bf16.msra.mxu0 %v1293
      %1546 = vmatprep.subr.bf16.mxu0 %v1298
      %1547 = vmatpush1.bf16.msra.mxu0 %v1297
      %1548 = vmatprep.subr.bf16.mxu0 %v1302
      %1549 = vmatpush1.bf16.msra.mxu0 %v1301
      %1550 = vmatprep.subr.bf16.mxu0 %v1306
      %1551 = vmatpush1.bf16.msra.mxu0 %v1305
      %1552 = vmatprep.subr.bf16.mxu0 %v1310
      %1553 = vmatpush1.bf16.msra.mxu0 %v1309
      %1554 = vmatprep.subr.bf16.mxu0 %v1314
      %1555 = vmatpush1.bf16.msra.mxu0 %v1313
      %1556 = vmatprep.subr.bf16.mxu0 0
      %1557 = vmatpush1.bf16.msra.mxu0 0
      %1558 = vmatprep.subr.bf16.mxu0 0
      %1559 = vmatpush1.bf16.msra.mxu0 0
      %1560 = vmatprep.subr.bf16.mxu0 0
      %1561 = vmatpush1.bf16.msra.mxu0 0
      %1562 = vmatprep.subr.bf16.mxu0 0
      %1563 = vmatpush1.bf16.msra.mxu0 0
      %1564 = vmatprep.subr.bf16.mxu0 0
      %1565 = vmatpush1.bf16.msra.mxu0 0
      %1566 = vmatprep.subr.bf16.mxu0 0
      %1567 = vmatpush1.bf16.msra.mxu0 0
      %1568 = vmatprep.subr.bf16.mxu0 0
      %1569 = vmatpush1.bf16.msra.mxu0 0
      %1570 = vmatprep.subr.bf16.mxu0 0
      %1571 = vmatpush1.bf16.msra.mxu0 0
      %1572 = vmatprep.mubr.bf16.mxu0 0
      %1573 = vmatmul.mubr.bf16.gmra.mrb[0].mxu0 %v261
      %v1574 = vpop.f32.mrb[0].mxu0
      %v1575 = vadd.f32 %v1178, %v1574
      %v1576 = vpop.f32.mrb[0].mxu0
      %v1577 = vadd.f32 %v1182, %v1576
      %v1578 = vpop.f32.mrb[0].mxu0
      %v1579 = vadd.f32 %v1178, %v1578
      %v1580 = vpop.f32.mrb[0].mxu0
      %v1581 = vadd.f32 %v1182, %v1580
      %1582 = vmatprep.mubr.bf16.mxu0 0
      %1583 = vmatmul.mubr.bf16.gmra.mrb[0].mxu0 %v262
      %v1584 = vpop.f32.mrb[0].mxu0
      %v1585 = vadd.f32 %v1178, %v1584
      %v1586 = vpop.f32.mrb[0].mxu0
      %v1587 = vadd.f32 %v1182, %v1586
      %v1588 = vpop.f32.mrb[0].mxu0
      %v1589 = vadd.f32 %v1178, %v1588
      %v1590 = vpop.f32.mrb[0].mxu0
      %v1591 = vadd.f32 %v1182, %v1590
      %1592 = vmatprep.mubr.bf16.mxu0 0
      %1593 = vmatmul.mubr.bf16.gmra.mrb[0].mxu0 %v263
      %v1594 = vpop.f32.mrb[0].mxu0
      %v1595 = vadd.f32 %v1178, %v1594
      %v1596 = vpop.f32.mrb[0].mxu0
      %v1597 = vadd.f32 %v1182, %v1596
      %v1598 = vpop.f32.mrb[0].mxu0
      %v1599 = vadd.f32 %v1178, %v1598
      %v1600 = vpop.f32.mrb[0].mxu0
      %v1601 = vadd.f32 %v1182, %v1600
      %1602 = vmatprep.mubr.bf16.mxu0 0
      %1603 = vmatmul.mubr.bf16.gmra.mrb[0].mxu0 %v264
      %v1604 = vpop.f32.mrb[0].mxu0
      %v1605 = vadd.f32 %v1178, %v1604
      %v1606 = vpop.f32.mrb[0].mxu0
      %v1607 = vadd.f32 %v1182, %v1606
      %v1608 = vpop.f32.mrb[0].mxu0
      %v1609 = vadd.f32 %v1178, %v1608
      %v1610 = vpop.f32.mrb[0].mxu0
      %v1611 = vadd.f32 %v1182, %v1610
      %1612 = vmatprep.mubr.bf16.mxu0 0
      %1613 = vmatmul.mubr.bf16.gmra.mrb[0].mxu0 %v265
      %v1614 = vpop.f32.mrb[0].mxu0
      %v1615 = vadd.f32 %v1178, %v1614
      %v1616 = vpop.f32.mrb[0].mxu0
      %v1617 = vadd.f32 %v1182, %v1616
      %v1618 = vpop.f32.mrb[0].mxu0
      %v1619 = vadd.f32 %v1178, %v1618
      %v1620 = vpop.f32.mrb[0].mxu0
      %v1621 = vadd.f32 %v1182, %v1620
      %1622 = vmatprep.mubr.bf16.mxu0 0
      %1623 = vmatmul.mubr.bf16.gmra.mrb[0].mxu0 %v266
      %v1624 = vpop.f32.mrb[0].mxu0
      %v1625 = vadd.f32 %v1178, %v1624
      %v1626 = vpop.f32.mrb[0].mxu0
      %v1627 = vadd.f32 %v1182, %v1626
      %v1628 = vpop.f32.mrb[0].mxu0
      %v1629 = vadd.f32 %v1178, %v1628
      %v1630 = vpop.f32.mrb[0].mxu0
      %v1631 = vadd.f32 %v1182, %v1630
      %1632 = vmatprep.mubr.bf16.mxu0 0
      %1633 = vmatmul.mubr.bf16.gmra.mrb[0].mxu0 %v267
      %v1634 = vpop.f32.mrb[0].mxu0
      %v1635 = vadd.f32 %v1178, %v1634
      %v1636 = vpop.f32.mrb[0].mxu0
      %v1637 = vadd.f32 %v1182, %v1636
      %v1638 = vpop.f32.mrb[0].mxu0
      %v1639 = vadd.f32 %v1178, %v1638
      %v1640 = vpop.f32.mrb[0].mxu0
      %v1641 = vadd.f32 %v1182, %v1640
      %1642 = vmatprep.mubr.bf16.mxu0 0
      %1643 = vmatmul.mubr.bf16.gmra.mrb[0].mxu0 %v268
      %v1644 = vpop.f32.mrb[0].mxu0
      %v1645 = vadd.f32 %v1178, %v1644
      %v1646 = vpop.f32.mrb[0].mxu0
      %v1647 = vadd.f32 %v1182, %v1646
      %v1648 = vpop.f32.mrb[0].mxu0
      %v1649 = vadd.f32 %v1178, %v1648
      %v1650 = vpop.f32.mrb[0].mxu0
      %v1651 = vadd.f32 %v1182, %v1650
      %1652 = vmatprep.mubr.bf16.mxu0 0
      %1653 = vmatmul.mubr.bf16.gmra.mrb[0].mxu0 %v269
      %v1654 = vpop.f32.mrb[0].mxu0
      %v1655 = vadd.f32 %v1178, %v1654
      %v1656 = vpop.f32.mrb[0].mxu0
      %v1657 = vadd.f32 %v1182, %v1656
      %v1658 = vpop.f32.mrb[0].mxu0
      %v1659 = vadd.f32 %v1178, %v1658
      %v1660 = vpop.f32.mrb[0].mxu0
      %v1661 = vadd.f32 %v1182, %v1660
      %1662 = vmatprep.mubr.bf16.mxu0 0
      %1663 = vmatmul.mubr.bf16.gmra.mrb[0].mxu0 %v270
      %v1664 = vpop.f32.mrb[0].mxu0
      %v1665 = vadd.f32 %v1178, %v1664
      %v1666 = vpop.f32.mrb[0].mxu0
      %v1667 = vadd.f32 %v1182, %v1666
      %v1668 = vpop.f32.mrb[0].mxu0
      %v1669 = vadd.f32 %v1178, %v1668
      %v1670 = vpop.f32.mrb[0].mxu0
      %v1671 = vadd.f32 %v1182, %v1670
      %1672 = vmatprep.mubr.bf16.mxu0 0
      %1673 = vmatmul.mubr.bf16.gmra.mrb[0].mxu0 %v271
      %v1674 = vpop.f32.mrb[0].mxu0
      %v1675 = vadd.f32 %v1178, %v1674
      %v1676 = vpop.f32.mrb[0].mxu0
      %v1677 = vadd.f32 %v1182, %v1676
      %v1678 = vpop.f32.mrb[0].mxu0
      %v1679 = vadd.f32 %v1178, %v1678
      %v1680 = vpop.f32.mrb[0].mxu0
      %v1681 = vadd.f32 %v1182, %v1680
      %1682 = vmatprep.mubr.bf16.mxu0 0
      %1683 = vmatmul.mubr.bf16.gmra.mrb[0].mxu0 %v272
      %v1684 = vpop.f32.mrb[0].mxu0
      %v1685 = vadd.f32 %v1178, %v1684
      %v1686 = vpop.f32.mrb[0].mxu0
      %v1687 = vadd.f32 %v1182, %v1686
      %v1688 = vpop.f32.mrb[0].mxu0
      %v1689 = vadd.f32 %v1178, %v1688
      %v1690 = vpop.f32.mrb[0].mxu0
      %v1691 = vadd.f32 %v1182, %v1690
      %1692 = vmatprep.mubr.bf16.mxu0 0
      %1693 = vmatmul.mubr.bf16.gmra.mrb[0].mxu0 %v273
      %v1694 = vpop.f32.mrb[0].mxu0
      %v1695 = vadd.f32 %v1178, %v1694
      %v1696 = vpop.f32.mrb[0].mxu0
      %v1697 = vadd.f32 %v1182, %v1696
      %v1698 = vpop.f32.mrb[0].mxu0
      %v1699 = vadd.f32 %v1178, %v1698
      %v1700 = vpop.f32.mrb[0].mxu0
      %v1701 = vadd.f32 %v1182, %v1700
      %1702 = vmatprep.mubr.bf16.mxu0 0
      %1703 = vmatmul.mubr.bf16.gmra.mrb[0].mxu0 %v274
      %v1704 = vpop.f32.mrb[0].mxu0
      %v1705 = vadd.f32 %v1178, %v1704
      %v1706 = vpop.f32.mrb[0].mxu0
      %v1707 = vadd.f32 %v1182, %v1706
      %v1708 = vpop.f32.mrb[0].mxu0
      %v1709 = vadd.f32 %v1178, %v1708
      %v1710 = vpop.f32.mrb[0].mxu0
      %v1711 = vadd.f32 %v1182, %v1710
      %1712 = vmatprep.mubr.bf16.mxu0 0
      %1713 = vmatmul.mubr.bf16.gmra.mrb[0].mxu0 %v275
      %v1714 = vpop.f32.mrb[0].mxu0
      %v1715 = vadd.f32 %v1178, %v1714
      %v1716 = vpop.f32.mrb[0].mxu0
      %v1717 = vadd.f32 %v1182, %v1716
      %v1718 = vpop.f32.mrb[0].mxu0
      %v1719 = vadd.f32 %v1178, %v1718
      %v1720 = vpop.f32.mrb[0].mxu0
      %v1721 = vadd.f32 %v1182, %v1720
      %1722 = vmatprep.mubr.bf16.mxu0 0
      %1723 = vmatmul.mubr.bf16.gmra.mrb[0].mxu0 %v276
      %v1724 = vpop.f32.mrb[0].mxu0
      %v1725 = vadd.f32 %v1178, %v1724
      %v1726 = vpop.f32.mrb[0].mxu0
      %v1727 = vadd.f32 %v1182, %v1726
      %v1728 = vpop.f32.mrb[0].mxu0
      %v1729 = vadd.f32 %v1178, %v1728
      %v1730 = vpop.f32.mrb[0].mxu0
      %v1731 = vadd.f32 %v1182, %v1730
      %1732 = vdwg.mxu0
      %v1733 = vmax.f32 %v1382, 0.0
      %v1734 = vmax.f32 %v1384, 0.0
      %v1735 = vmax.f32 %v1575, 0.0
      %v1736 = vmax.f32 %v1577, 0.0
      %v1737 = vmax.f32 %v1386, 0.0
      %v1738 = vmax.f32 %v1388, 0.0
      %v1739 = vmax.f32 %v1579, 0.0
      %v1740 = vmax.f32 %v1581, 0.0
      %v1741 = vmax.f32 %v1392, 0.0
      %v1742 = vmax.f32 %v1394, 0.0
      %v1743 = vmax.f32 %v1585, 0.0
      %v1744 = vmax.f32 %v1587, 0.0
      %v1745 = vmax.f32 %v1396, 0.0
      %v1746 = vmax.f32 %v1398, 0.0
      %v1747 = vmax.f32 %v1589, 0.0
      %v1748 = vmax.f32 %v1591, 0.0
      %v1749 = vmax.f32 %v1402, 0.0
      %v1750 = vmax.f32 %v1404, 0.0
      %v1751 = vmax.f32 %v1595, 0.0
      %v1752 = vmax.f32 %v1597, 0.0
      %v1753 = vmax.f32 %v1406, 0.0
      %v1754 = vmax.f32 %v1408, 0.0
      %v1755 = vmax.f32 %v1599, 0.0
      %v1756 = vmax.f32 %v1601, 0.0
      %v1757 = vmax.f32 %v1412, 0.0
      %v1758 = vmax.f32 %v1414, 0.0
      %v1759 = vmax.f32 %v1605, 0.0
      %v1760 = vmax.f32 %v1607, 0.0
      %v1761 = vmax.f32 %v1416, 0.0
      %v1762 = vmax.f32 %v1418, 0.0
      %v1763 = vmax.f32 %v1609, 0.0
      %v1764 = vmax.f32 %v1611, 0.0
      %v1765 = vmax.f32 %v1422, 0.0
      %v1766 = vmax.f32 %v1424, 0.0
      %v1767 = vmax.f32 %v1615, 0.0
      %v1768 = vmax.f32 %v1617, 0.0
      %v1769 = vmax.f32 %v1426, 0.0
      %v1770 = vmax.f32 %v1428, 0.0
      %v1771 = vmax.f32 %v1619, 0.0
      %v1772 = vmax.f32 %v1621, 0.0
      %v1773 = vmax.f32 %v1432, 0.0
      %v1774 = vmax.f32 %v1434, 0.0
      %v1775 = vmax.f32 %v1625, 0.0
      %v1776 = vmax.f32 %v1627, 0.0
      %v1777 = vmax.f32 %v1436, 0.0
      %v1778 = vmax.f32 %v1438, 0.0
      %v1779 = vmax.f32 %v1629, 0.0
      %v1780 = vmax.f32 %v1631, 0.0
      %v1781 = vmax.f32 %v1442, 0.0
      %v1782 = vmax.f32 %v1444, 0.0
      %v1783 = vmax.f32 %v1635, 0.0
      %v1784 = vmax.f32 %v1637, 0.0
      %v1785 = vmax.f32 %v1446, 0.0
      %v1786 = vmax.f32 %v1448, 0.0
      %v1787 = vmax.f32 %v1639, 0.0
      %v1788 = vmax.f32 %v1641, 0.0
      %v1789 = vmax.f32 %v1452, 0.0
      %v1790 = vmax.f32 %v1454, 0.0
      %v1791 = vmax.f32 %v1645, 0.0
      %v1792 = vmax.f32 %v1647, 0.0
      %v1793 = vmax.f32 %v1456, 0.0
      %v1794 = vmax.f32 %v1458, 0.0
      %v1795 = vmax.f32 %v1649, 0.0
      %v1796 = vmax.f32 %v1651, 0.0
      %v1797 = vmax.f32 %v1462, 0.0
      %v1798 = vmax.f32 %v1464, 0.0
      %v1799 = vmax.f32 %v1655, 0.0
      %v1800 = vmax.f32 %v1657, 0.0
      %v1801 = vmax.f32 %v1466, 0.0
      %v1802 = vmax.f32 %v1468, 0.0
      %v1803 = vmax.f32 %v1659, 0.0
      %v1804 = vmax.f32 %v1661, 0.0
      %v1805 = vmax.f32 %v1472, 0.0
      %v1806 = vmax.f32 %v1474, 0.0
      %v1807 = vmax.f32 %v1665, 0.0
      %v1808 = vmax.f32 %v1667, 0.0
      %v1809 = vmax.f32 %v1476, 0.0
      %v1810 = vmax.f32 %v1478, 0.0
      %v1811 = vmax.f32 %v1669, 0.0
      %v1812 = vmax.f32 %v1671, 0.0
      %v1813 = vmax.f32 %v1482, 0.0
      %v1814 = vmax.f32 %v1484, 0.0
      %v1815 = vmax.f32 %v1675, 0.0
      %v1816 = vmax.f32 %v1677, 0.0
      %v1817 = vmax.f32 %v1486, 0.0
      %v1818 = vmax.f32 %v1488, 0.0
      %v1819 = vmax.f32 %v1679, 0.0
      %v1820 = vmax.f32 %v1681, 0.0
      %v1821 = vmax.f32 %v1492, 0.0
      %v1822 = vmax.f32 %v1494, 0.0
      %v1823 = vmax.f32 %v1685, 0.0
      %v1824 = vmax.f32 %v1687, 0.0
      %v1825 = vmax.f32 %v1496, 0.0
      %v1826 = vmax.f32 %v1498, 0.0
      %v1827 = vmax.f32 %v1689, 0.0
      %v1828 = vmax.f32 %v1691, 0.0
      %v1829 = vmax.f32 %v1502, 0.0
      %v1830 = vmax.f32 %v1504, 0.0
      %v1831 = vmax.f32 %v1695, 0.0
      %v1832 = vmax.f32 %v1697, 0.0
      %v1833 = vmax.f32 %v1506, 0.0
      %v1834 = vmax.f32 %v1508, 0.0
      %v1835 = vmax.f32 %v1699, 0.0
      %v1836 = vmax.f32 %v1701, 0.0
      %v1837 = vmax.f32 %v1512, 0.0
      %v1838 = vmax.f32 %v1514, 0.0
      %v1839 = vmax.f32 %v1705, 0.0
      %v1840 = vmax.f32 %v1707, 0.0
      %v1841 = vmax.f32 %v1516, 0.0
      %v1842 = vmax.f32 %v1518, 0.0
      %v1843 = vmax.f32 %v1709, 0.0
      %v1844 = vmax.f32 %v1711, 0.0
      %v1845 = vmax.f32 %v1522, 0.0
      %v1846 = vmax.f32 %v1524, 0.0
      %v1847 = vmax.f32 %v1715, 0.0
      %v1848 = vmax.f32 %v1717, 0.0
      %v1849 = vmax.f32 %v1526, 0.0
      %v1850 = vmax.f32 %v1528, 0.0
      %v1851 = vmax.f32 %v1719, 0.0
      %v1852 = vmax.f32 %v1721, 0.0
      %v1853 = vmax.f32 %v1532, 0.0
      %v1854 = vmax.f32 %v1534, 0.0
      %v1855 = vmax.f32 %v1725, 0.0
      %v1856 = vmax.f32 %v1727, 0.0
      %v1857 = vmax.f32 %v1536, 0.0
      %v1858 = vmax.f32 %v1538, 0.0
      %v1859 = vmax.f32 %v1729, 0.0
      %v1860 = vmax.f32 %v1731, 0.0
      %v1861 = vpack.c.bf16 %v1737, %v1733
      %v1862 = vpack.c.bf16 %v1738, %v1734
      %v1863 = vpack.c.bf16 %v1739, %v1735
      %v1864 = vpack.c.bf16 %v1740, %v1736
      %v1865 = vpack.c.bf16 %v1745, %v1741
      %v1866 = vpack.c.bf16 %v1746, %v1742
      %v1867 = vpack.c.bf16 %v1747, %v1743
      %v1868 = vpack.c.bf16 %v1748, %v1744
      %v1869 = vpack.c.bf16 %v1753, %v1749
      %v1870 = vpack.c.bf16 %v1754, %v1750
      %v1871 = vpack.c.bf16 %v1755, %v1751
      %v1872 = vpack.c.bf16 %v1756, %v1752
      %v1873 = vpack.c.bf16 %v1761, %v1757
      %v1874 = vpack.c.bf16 %v1762, %v1758
      %v1875 = vpack.c.bf16 %v1763, %v1759
      %v1876 = vpack.c.bf16 %v1764, %v1760
      %v1877 = vpack.c.bf16 %v1769, %v1765
      %v1878 = vpack.c.bf16 %v1770, %v1766
      %v1879 = vpack.c.bf16 %v1771, %v1767
      %v1880 = vpack.c.bf16 %v1772, %v1768
      %v1881 = vpack.c.bf16 %v1777, %v1773
      %v1882 = vpack.c.bf16 %v1778, %v1774
      %v1883 = vpack.c.bf16 %v1779, %v1775
      %v1884 = vpack.c.bf16 %v1780, %v1776
      %v1885 = vpack.c.bf16 %v1785, %v1781
      %v1886 = vpack.c.bf16 %v1786, %v1782
      %v1887 = vpack.c.bf16 %v1787, %v1783
      %v1888 = vpack.c.bf16 %v1788, %v1784
      %v1889 = vpack.c.bf16 %v1793, %v1789
      %v1890 = vpack.c.bf16 %v1794, %v1790
      %v1891 = vpack.c.bf16 %v1795, %v1791
      %v1892 = vpack.c.bf16 %v1796, %v1792
      %v1893 = vpack.c.bf16 %v1801, %v1797
      %v1894 = vpack.c.bf16 %v1802, %v1798
      %v1895 = vpack.c.bf16 %v1803, %v1799
      %v1896 = vpack.c.bf16 %v1804, %v1800
      %v1897 = vpack.c.bf16 %v1809, %v1805
      %v1898 = vpack.c.bf16 %v1810, %v1806
      %v1899 = vpack.c.bf16 %v1811, %v1807
      %v1900 = vpack.c.bf16 %v1812, %v1808
      %v1901 = vpack.c.bf16 %v1817, %v1813
      %v1902 = vpack.c.bf16 %v1818, %v1814
      %v1903 = vpack.c.bf16 %v1819, %v1815
      %v1904 = vpack.c.bf16 %v1820, %v1816
      %v1905 = vpack.c.bf16 %v1825, %v1821
      %v1906 = vpack.c.bf16 %v1826, %v1822
      %v1907 = vpack.c.bf16 %v1827, %v1823
      %v1908 = vpack.c.bf16 %v1828, %v1824
      %v1909 = vpack.c.bf16 %v1833, %v1829
      %v1910 = vpack.c.bf16 %v1834, %v1830
      %v1911 = vpack.c.bf16 %v1835, %v1831
      %v1912 = vpack.c.bf16 %v1836, %v1832
      %v1913 = vpack.c.bf16 %v1841, %v1837
      %v1914 = vpack.c.bf16 %v1842, %v1838
      %v1915 = vpack.c.bf16 %v1843, %v1839
      %v1916 = vpack.c.bf16 %v1844, %v1840
      %v1917 = vpack.c.bf16 %v1849, %v1845
      %v1918 = vpack.c.bf16 %v1850, %v1846
      %v1919 = vpack.c.bf16 %v1851, %v1847
      %v1920 = vpack.c.bf16 %v1852, %v1848
      %v1921 = vpack.c.bf16 %v1857, %v1853
      %v1922 = vpack.c.bf16 %v1858, %v1854
      %v1923 = vpack.c.bf16 %v1859, %v1855
      %v1924 = vpack.c.bf16 %v1860, %v1856
      %v1925 = vld [vmem:[%s3 + $0x100] sm:$0xf]
      %v1926 = vld [vmem:[%s3 + $0x104] sm:$0xf]
      %v1927 = vld [vmem:[%s3 + $0x108] sm:$0xf]
      %v1928 = vld [vmem:[%s3 + $0x10c] sm:$0xf]
      %v1929 = vld [vmem:[%s3 + $0x110] sm:$0xf]
      %v1930 = vld [vmem:[%s3 + $0x114] sm:$0xf]
      %v1931 = vld [vmem:[%s3 + $0x118] sm:$0xf]
      %v1932 = vld [vmem:[%s3 + $0x11c] sm:$0xf]
      %v1933 = vld [vmem:[%s3 + $0x120] sm:$0xf]
      %v1934 = vld [vmem:[%s3 + $0x124] sm:$0xf]
      %v1935 = vld [vmem:[%s3 + $0x128] sm:$0xf]
      %v1936 = vld [vmem:[%s3 + $0x12c] sm:$0xf]
      %v1937 = vld [vmem:[%s3 + $0x130] sm:$0xf]
      %v1938 = vld [vmem:[%s3 + $0x134] sm:$0xf]
      %v1939 = vld [vmem:[%s3 + $0x138] sm:$0xf]
      %v1940 = vld [vmem:[%s3 + $0x13c] sm:$0xf]
      %v1941 = vld [vmem:[%s3 + $0x140] sm:$0xf]
      %v1942 = vld [vmem:[%s3 + $0x144] sm:$0xf]
      %v1943 = vld [vmem:[%s3 + $0x148] sm:$0xf]
      %v1944 = vld [vmem:[%s3 + $0x14c] sm:$0xf]
      %v1945 = vld [vmem:[%s3 + $0x150] sm:$0xf]
      %v1946 = vld [vmem:[%s3 + $0x154] sm:$0xf]
      %v1947 = vld [vmem:[%s3 + $0x158] sm:$0xf]
      %v1948 = vld [vmem:[%s3 + $0x15c] sm:$0xf]
      %v1949 = vld [vmem:[%s3 + $0x160] sm:$0xf]
      %v1950 = vld [vmem:[%s3 + $0x164] sm:$0xf]
      %v1951 = vld [vmem:[%s3 + $0x168] sm:$0xf]
      %v1952 = vld [vmem:[%s3 + $0x16c] sm:$0xf]
      %v1953 = vld [vmem:[%s3 + $0x170] sm:$0xf]
      %v1954 = vld [vmem:[%s3 + $0x174] sm:$0xf]
      %v1955 = vld [vmem:[%s3 + $0x178] sm:$0xf]
      %v1956 = vld [vmem:[%s3 + $0x17c] sm:$0xf]
      %v1957 = vld [vmem:[%s3 + $0x180] sm:$0xf]
      %v1958 = vld [vmem:[%s3 + $0x184] sm:$0xf]
      %v1959 = vld [vmem:[%s3 + $0x188] sm:$0xf]
      %v1960 = vld [vmem:[%s3 + $0x18c] sm:$0xf]
      %v1961 = vld [vmem:[%s3 + $0x190] sm:$0xf]
      %v1962 = vld [vmem:[%s3 + $0x194] sm:$0xf]
      %v1963 = vld [vmem:[%s3 + $0x198] sm:$0xf]
      %v1964 = vld [vmem:[%s3 + $0x19c] sm:$0xf]
      %v1965 = vld [vmem:[%s3 + $0x1a0] sm:$0xf]
      %v1966 = vld [vmem:[%s3 + $0x1a4] sm:$0xf]
      %v1967 = vld [vmem:[%s3 + $0x1a8] sm:$0xf]
      %v1968 = vld [vmem:[%s3 + $0x1ac] sm:$0xf]
      %v1969 = vld [vmem:[%s3 + $0x1b0] sm:$0xf]
      %v1970 = vld [vmem:[%s3 + $0x1b4] sm:$0xf]
      %v1971 = vld [vmem:[%s3 + $0x1b8] sm:$0xf]
      %v1972 = vld [vmem:[%s3 + $0x1bc] sm:$0xf]
      %v1973 = vld [vmem:[%s3 + $0x1c0] sm:$0xf]
      %v1974 = vld [vmem:[%s3 + $0x1c4] sm:$0xf]
      %v1975 = vld [vmem:[%s3 + $0x1c8] sm:$0xf]
      %v1976 = vld [vmem:[%s3 + $0x1cc] sm:$0xf]
      %v1977 = vld [vmem:[%s3 + $0x1d0] sm:$0xf]
      %v1978 = vld [vmem:[%s3 + $0x1d4] sm:$0xf]
      %v1979 = vld [vmem:[%s3 + $0x1d8] sm:$0xf]
      %v1980 = vld [vmem:[%s3 + $0x1dc] sm:$0xf]
      %v1981 = vld [vmem:[%s3 + $0x1e0] sm:$0xf]
      %v1982 = vld [vmem:[%s3 + $0x1e4] sm:$0xf]
      %v1983 = vld [vmem:[%s3 + $0x1e8] sm:$0xf]
      %v1984 = vld [vmem:[%s3 + $0x1ec] sm:$0xf]
      %v1985 = vld [vmem:[%s3 + $0x1f0] sm:$0xf]
      %v1986 = vld [vmem:[%s3 + $0x1f4] sm:$0xf]
      %v1987 = vld [vmem:[%s3 + $0x1f8] sm:$0xf]
      %v1988 = vld [vmem:[%s3 + $0x1fc] sm:$0xf]
      %v2053 = vunpack.c.l.b16 %v1925
      %v2054 = vunpack.c.l.b16 %v1926
      %v2055 = vunpack.c.l.b16 %v1927
      %v2056 = vunpack.c.l.b16 %v1928
      %v2057 = vunpack.c.l.b16 %v1929
      %v2058 = vunpack.c.l.b16 %v1930
      %v2059 = vunpack.c.l.b16 %v1931
      %v2060 = vunpack.c.l.b16 %v1932
      %v2061 = vunpack.c.l.b16 %v1933
      %v2062 = vunpack.c.l.b16 %v1934
      %v2063 = vunpack.c.l.b16 %v1935
      %v2064 = vunpack.c.l.b16 %v1936
      %v2065 = vunpack.c.l.b16 %v1937
      %v2066 = vunpack.c.l.b16 %v1938
      %v2067 = vunpack.c.l.b16 %v1939
      %v2068 = vunpack.c.l.b16 %v1940
      %v2069 = vunpack.c.l.b16 %v1941
      %v2070 = vunpack.c.l.b16 %v1942
      %v2071 = vunpack.c.l.b16 %v1943
      %v2072 = vunpack.c.l.b16 %v1944
      %v2073 = vunpack.c.l.b16 %v1945
      %v2074 = vunpack.c.l.b16 %v1946
      %v2075 = vunpack.c.l.b16 %v1947
      %v2076 = vunpack.c.l.b16 %v1948
      %v2077 = vunpack.c.l.b16 %v1949
      %v2078 = vunpack.c.l.b16 %v1950
      %v2079 = vunpack.c.l.b16 %v1951
      %v2080 = vunpack.c.l.b16 %v1952
      %v2081 = vunpack.c.l.b16 %v1953
      %v2082 = vunpack.c.l.b16 %v1954
      %v2083 = vunpack.c.l.b16 %v1955
      %v2084 = vunpack.c.l.b16 %v1956
      %v2085 = vunpack.c.l.b16 %v1957
      %v2086 = vunpack.c.l.b16 %v1958
      %v2087 = vunpack.c.l.b16 %v1959
      %v2088 = vunpack.c.l.b16 %v1960
      %v2089 = vunpack.c.l.b16 %v1961
      %v2090 = vunpack.c.l.b16 %v1962
      %v2091 = vunpack.c.l.b16 %v1963
      %v2092 = vunpack.c.l.b16 %v1964
      %v2093 = vunpack.c.l.b16 %v1965
      %v2094 = vunpack.c.l.b16 %v1966
      %v2095 = vunpack.c.l.b16 %v1967
      %v2096 = vunpack.c.l.b16 %v1968
      %v2097 = vunpack.c.l.b16 %v1969
      %v2098 = vunpack.c.l.b16 %v1970
      %v2099 = vunpack.c.l.b16 %v1971
      %v2100 = vunpack.c.l.b16 %v1972
      %v2101 = vunpack.c.l.b16 %v1973
      %v2102 = vunpack.c.l.b16 %v1974
      %v2103 = vunpack.c.l.b16 %v1975
      %v2104 = vunpack.c.l.b16 %v1976
      %v2105 = vunpack.c.l.b16 %v1977
      %v2106 = vunpack.c.l.b16 %v1978
      %v2107 = vunpack.c.l.b16 %v1979
      %v2108 = vunpack.c.l.b16 %v1980
      %v2109 = vunpack.c.l.b16 %v1981
      %v2110 = vunpack.c.l.b16 %v1982
      %v2111 = vunpack.c.l.b16 %v1983
      %v2112 = vunpack.c.l.b16 %v1984
      %v2113 = vunpack.c.l.b16 %v1985
      %v2114 = vunpack.c.l.b16 %v1986
      %v2115 = vunpack.c.l.b16 %v1987
      %v2116 = vunpack.c.l.b16 %v1988
      %v2117 = vpack.c.b16 %v2054, %v2053
      %v2118 = vpack.c.b16 %v2056, %v2055
      %v2119 = vpack.c.b16 %v2058, %v2057
      %v2120 = vpack.c.b16 %v2060, %v2059
      %v2121 = vpack.c.b16 %v2062, %v2061
      %v2122 = vpack.c.b16 %v2064, %v2063
      %v2123 = vpack.c.b16 %v2066, %v2065
      %v2124 = vpack.c.b16 %v2068, %v2067
      %v2125 = vpack.c.b16 %v2070, %v2069
      %v2126 = vpack.c.b16 %v2072, %v2071
      %v2127 = vpack.c.b16 %v2074, %v2073
      %v2128 = vpack.c.b16 %v2076, %v2075
      %v2129 = vpack.c.b16 %v2078, %v2077
      %v2130 = vpack.c.b16 %v2080, %v2079
      %v2131 = vpack.c.b16 %v2082, %v2081
      %v2132 = vpack.c.b16 %v2084, %v2083
      %v2133 = vpack.c.b16 %v2086, %v2085
      %v2134 = vpack.c.b16 %v2088, %v2087
      %v2135 = vpack.c.b16 %v2090, %v2089
      %v2136 = vpack.c.b16 %v2092, %v2091
      %v2137 = vpack.c.b16 %v2094, %v2093
      %v2138 = vpack.c.b16 %v2096, %v2095
      %v2139 = vpack.c.b16 %v2098, %v2097
      %v2140 = vpack.c.b16 %v2100, %v2099
      %v2141 = vpack.c.b16 %v2102, %v2101
      %v2142 = vpack.c.b16 %v2104, %v2103
      %v2143 = vpack.c.b16 %v2106, %v2105
      %v2144 = vpack.c.b16 %v2108, %v2107
      %v2145 = vpack.c.b16 %v2110, %v2109
      %v2146 = vpack.c.b16 %v2112, %v2111
      %v2147 = vpack.c.b16 %v2114, %v2113
      %v2148 = vpack.c.b16 %v2116, %v2115
      %2181 = vmatprep.subr.bf16.mxu0 0
      %2182 = vmatpush1.bf16.msra.mxu0 %v2117
      %2183 = vmatprep.subr.bf16.mxu0 0
      %2184 = vmatpush1.bf16.msra.mxu0 %v2118
      %2185 = vmatprep.subr.bf16.mxu0 0
      %2186 = vmatpush1.bf16.msra.mxu0 %v2119
      %2187 = vmatprep.subr.bf16.mxu0 0
      %2188 = vmatpush1.bf16.msra.mxu0 %v2120
      %2189 = vmatprep.subr.bf16.mxu0 0
      %2190 = vmatpush1.bf16.msra.mxu0 %v2121
      %2191 = vmatprep.subr.bf16.mxu0 0
      %2192 = vmatpush1.bf16.msra.mxu0 %v2122
      %2193 = vmatprep.subr.bf16.mxu0 0
      %2194 = vmatpush1.bf16.msra.mxu0 %v2123
      %2195 = vmatprep.subr.bf16.mxu0 0
      %2196 = vmatpush1.bf16.msra.mxu0 %v2124
      %2197 = vmatprep.subr.bf16.mxu0 0
      %2198 = vmatpush1.bf16.msra.mxu0 %v2125
      %2199 = vmatprep.subr.bf16.mxu0 0
      %2200 = vmatpush1.bf16.msra.mxu0 %v2126
      %2201 = vmatprep.subr.bf16.mxu0 0
      %2202 = vmatpush1.bf16.msra.mxu0 %v2127
      %2203 = vmatprep.subr.bf16.mxu0 0
      %2204 = vmatpush1.bf16.msra.mxu0 %v2128
      %2205 = vmatprep.subr.bf16.mxu0 0
      %2206 = vmatpush1.bf16.msra.mxu0 %v2129
      %2207 = vmatprep.subr.bf16.mxu0 0
      %2208 = vmatpush1.bf16.msra.mxu0 %v2130
      %2209 = vmatprep.subr.bf16.mxu0 0
      %2210 = vmatpush1.bf16.msra.mxu0 %v2131
      %2211 = vmatprep.subr.bf16.mxu0 0
      %2212 = vmatpush1.bf16.msra.mxu0 %v2132
      %2213 = vmatprep.mubr.bf16.mxu0 %v1862
      %2214 = vmatmul.mubr.bf16.gmra.mrb[0].mxu0 %v1861
      %v2215 = vpop.f32.mrb[0].mxu0
      %v2216 = vadd.f32 0.0, %v2215
      %v2217 = vpop.f32.mrb[0].mxu0
      %v2218 = vpop.f32.mrb[0].mxu0
      %v2219 = vadd.f32 0.0, %v2218
      %v2220 = vpop.f32.mrb[0].mxu0
      %2221 = vmatprep.mubr.bf16.mxu0 %v1866
      %2222 = vmatmul.mubr.bf16.gmra.mrb[0].mxu0 %v1865
      %v2223 = vpop.f32.mrb[0].mxu0
      %v2224 = vadd.f32 0.0, %v2223
      %v2225 = vpop.f32.mrb[0].mxu0
      %v2226 = vpop.f32.mrb[0].mxu0
      %v2227 = vadd.f32 0.0, %v2226
      %v2228 = vpop.f32.mrb[0].mxu0
      %2229 = vmatprep.mubr.bf16.mxu0 %v1870
      %2230 = vmatmul.mubr.bf16.gmra.mrb[0].mxu0 %v1869
      %v2231 = vpop.f32.mrb[0].mxu0
      %v2232 = vadd.f32 0.0, %v2231
      %v2233 = vpop.f32.mrb[0].mxu0
      %v2234 = vpop.f32.mrb[0].mxu0
      %v2235 = vadd.f32 0.0, %v2234
      %v2236 = vpop.f32.mrb[0].mxu0
      %2237 = vmatprep.mubr.bf16.mxu0 %v1874
      %2238 = vmatmul.mubr.bf16.gmra.mrb[0].mxu0 %v1873
      %v2239 = vpop.f32.mrb[0].mxu0
      %v2240 = vadd.f32 0.0, %v2239
      %v2241 = vpop.f32.mrb[0].mxu0
      %v2242 = vpop.f32.mrb[0].mxu0
      %v2243 = vadd.f32 0.0, %v2242
      %v2244 = vpop.f32.mrb[0].mxu0
      %2245 = vmatprep.mubr.bf16.mxu0 %v1878
      %2246 = vmatmul.mubr.bf16.gmra.mrb[0].mxu0 %v1877
      %v2247 = vpop.f32.mrb[0].mxu0
      %v2248 = vadd.f32 0.0, %v2247
      %v2249 = vpop.f32.mrb[0].mxu0
      %v2250 = vpop.f32.mrb[0].mxu0
      %v2251 = vadd.f32 0.0, %v2250
      %v2252 = vpop.f32.mrb[0].mxu0
      %2253 = vmatprep.mubr.bf16.mxu0 %v1882
      %2254 = vmatmul.mubr.bf16.gmra.mrb[0].mxu0 %v1881
      %v2255 = vpop.f32.mrb[0].mxu0
      %v2256 = vadd.f32 0.0, %v2255
      %v2257 = vpop.f32.mrb[0].mxu0
      %v2258 = vpop.f32.mrb[0].mxu0
      %v2259 = vadd.f32 0.0, %v2258
      %v2260 = vpop.f32.mrb[0].mxu0
      %2261 = vmatprep.mubr.bf16.mxu0 %v1886
      %2262 = vmatmul.mubr.bf16.gmra.mrb[0].mxu0 %v1885
      %v2263 = vpop.f32.mrb[0].mxu0
      %v2264 = vadd.f32 0.0, %v2263
      %v2265 = vpop.f32.mrb[0].mxu0
      %v2266 = vpop.f32.mrb[0].mxu0
      %v2267 = vadd.f32 0.0, %v2266
      %v2268 = vpop.f32.mrb[0].mxu0
      %2269 = vmatprep.mubr.bf16.mxu0 %v1890
      %2270 = vmatmul.mubr.bf16.gmra.mrb[0].mxu0 %v1889
      %v2271 = vpop.f32.mrb[0].mxu0
      %v2272 = vadd.f32 0.0, %v2271
      %v2273 = vpop.f32.mrb[0].mxu0
      %v2274 = vpop.f32.mrb[0].mxu0
      %v2275 = vadd.f32 0.0, %v2274
      %v2276 = vpop.f32.mrb[0].mxu0
      %2277 = vmatprep.mubr.bf16.mxu0 %v1894
      %2278 = vmatmul.mubr.bf16.gmra.mrb[0].mxu0 %v1893
      %v2279 = vpop.f32.mrb[0].mxu0
      %v2280 = vadd.f32 0.0, %v2279
      %v2281 = vpop.f32.mrb[0].mxu0
      %v2282 = vpop.f32.mrb[0].mxu0
      %v2283 = vadd.f32 0.0, %v2282
      %v2284 = vpop.f32.mrb[0].mxu0
      %2285 = vmatprep.mubr.bf16.mxu0 %v1898
      %2286 = vmatmul.mubr.bf16.gmra.mrb[0].mxu0 %v1897
      %v2287 = vpop.f32.mrb[0].mxu0
      %v2288 = vadd.f32 0.0, %v2287
      %v2289 = vpop.f32.mrb[0].mxu0
      %v2290 = vpop.f32.mrb[0].mxu0
      %v2291 = vadd.f32 0.0, %v2290
      %v2292 = vpop.f32.mrb[0].mxu0
      %2293 = vmatprep.mubr.bf16.mxu0 %v1902
      %2294 = vmatmul.mubr.bf16.gmra.mrb[0].mxu0 %v1901
      %v2295 = vpop.f32.mrb[0].mxu0
      %v2296 = vadd.f32 0.0, %v2295
      %v2297 = vpop.f32.mrb[0].mxu0
      %v2298 = vpop.f32.mrb[0].mxu0
      %v2299 = vadd.f32 0.0, %v2298
      %v2300 = vpop.f32.mrb[0].mxu0
      %2301 = vmatprep.mubr.bf16.mxu0 %v1906
      %2302 = vmatmul.mubr.bf16.gmra.mrb[0].mxu0 %v1905
      %v2303 = vpop.f32.mrb[0].mxu0
      %v2304 = vadd.f32 0.0, %v2303
      %v2305 = vpop.f32.mrb[0].mxu0
      %v2306 = vpop.f32.mrb[0].mxu0
      %v2307 = vadd.f32 0.0, %v2306
      %v2308 = vpop.f32.mrb[0].mxu0
      %2309 = vmatprep.mubr.bf16.mxu0 %v1910
      %2310 = vmatmul.mubr.bf16.gmra.mrb[0].mxu0 %v1909
      %v2311 = vpop.f32.mrb[0].mxu0
      %v2312 = vadd.f32 0.0, %v2311
      %v2313 = vpop.f32.mrb[0].mxu0
      %v2314 = vpop.f32.mrb[0].mxu0
      %v2315 = vadd.f32 0.0, %v2314
      %v2316 = vpop.f32.mrb[0].mxu0
      %2317 = vmatprep.mubr.bf16.mxu0 %v1914
      %2318 = vmatmul.mubr.bf16.gmra.mrb[0].mxu0 %v1913
      %v2319 = vpop.f32.mrb[0].mxu0
      %v2320 = vadd.f32 0.0, %v2319
      %v2321 = vpop.f32.mrb[0].mxu0
      %v2322 = vpop.f32.mrb[0].mxu0
      %v2323 = vadd.f32 0.0, %v2322
      %v2324 = vpop.f32.mrb[0].mxu0
      %2325 = vmatprep.mubr.bf16.mxu0 %v1918
      %2326 = vmatmul.mubr.bf16.gmra.mrb[0].mxu0 %v1917
      %v2327 = vpop.f32.mrb[0].mxu0
      %v2328 = vadd.f32 0.0, %v2327
      %v2329 = vpop.f32.mrb[0].mxu0
      %v2330 = vpop.f32.mrb[0].mxu0
      %v2331 = vadd.f32 0.0, %v2330
      %v2332 = vpop.f32.mrb[0].mxu0
      %2333 = vmatprep.mubr.bf16.mxu0 %v1922
      %2334 = vmatmul.mubr.bf16.gmra.mrb[0].mxu0 %v1921
      %v2335 = vpop.f32.mrb[0].mxu0
      %v2336 = vadd.f32 0.0, %v2335
      %v2337 = vpop.f32.mrb[0].mxu0
      %v2338 = vpop.f32.mrb[0].mxu0
      %v2339 = vadd.f32 0.0, %v2338
      %v2340 = vpop.f32.mrb[0].mxu0
      %2341 = vdwg.mxu0
      %2342 = vmatprep.subr.bf16.mxu0 0
      %2343 = vmatpush1.bf16.msra.mxu0 %v2133
      %2344 = vmatprep.subr.bf16.mxu0 0
      %2345 = vmatpush1.bf16.msra.mxu0 %v2134
      %2346 = vmatprep.subr.bf16.mxu0 0
      %2347 = vmatpush1.bf16.msra.mxu0 %v2135
      %2348 = vmatprep.subr.bf16.mxu0 0
      %2349 = vmatpush1.bf16.msra.mxu0 %v2136
      %2350 = vmatprep.subr.bf16.mxu0 0
      %2351 = vmatpush1.bf16.msra.mxu0 %v2137
      %2352 = vmatprep.subr.bf16.mxu0 0
      %2353 = vmatpush1.bf16.msra.mxu0 %v2138
      %2354 = vmatprep.subr.bf16.mxu0 0
      %2355 = vmatpush1.bf16.msra.mxu0 %v2139
      %2356 = vmatprep.subr.bf16.mxu0 0
      %2357 = vmatpush1.bf16.msra.mxu0 %v2140
      %2358 = vmatprep.subr.bf16.mxu0 0
      %2359 = vmatpush1.bf16.msra.mxu0 %v2141
      %2360 = vmatprep.subr.bf16.mxu0 0
      %2361 = vmatpush1.bf16.msra.mxu0 %v2142
      %2362 = vmatprep.subr.bf16.mxu0 0
      %2363 = vmatpush1.bf16.msra.mxu0 %v2143
      %2364 = vmatprep.subr.bf16.mxu0 0
      %2365 = vmatpush1.bf16.msra.mxu0 %v2144
      %2366 = vmatprep.subr.bf16.mxu0 0
      %2367 = vmatpush1.bf16.msra.mxu0 %v2145
      %2368 = vmatprep.subr.bf16.mxu0 0
      %2369 = vmatpush1.bf16.msra.mxu0 %v2146
      %2370 = vmatprep.subr.bf16.mxu0 0
      %2371 = vmatpush1.bf16.msra.mxu0 %v2147
      %2372 = vmatprep.subr.bf16.mxu0 0
      %2373 = vmatpush1.bf16.msra.mxu0 %v2148
      %2374 = vmatprep.mubr.bf16.mxu0 %v1864
      %2375 = vmatmul.mubr.bf16.gmra.mrb[0].mxu0 %v1863
      %v2376 = vpop.f32.mrb[0].mxu0
      %v2377 = vadd.f32 %v2216, %v2376
      %v2378 = vpop.f32.mrb[0].mxu0
      %v2379 = vpop.f32.mrb[0].mxu0
      %v2380 = vadd.f32 %v2219, %v2379
      %v2381 = vpop.f32.mrb[0].mxu0
      %2382 = vmatprep.mubr.bf16.mxu0 %v1868
      %2383 = vmatmul.mubr.bf16.gmra.mrb[0].mxu0 %v1867
      %v2384 = vpop.f32.mrb[0].mxu0
      %v2385 = vadd.f32 %v2224, %v2384
      %v2386 = vpop.f32.mrb[0].mxu0
      %v2387 = vpop.f32.mrb[0].mxu0
      %v2388 = vadd.f32 %v2227, %v2387
      %v2389 = vpop.f32.mrb[0].mxu0
      %2390 = vmatprep.mubr.bf16.mxu0 %v1872
      %2391 = vmatmul.mubr.bf16.gmra.mrb[0].mxu0 %v1871
      %v2392 = vpop.f32.mrb[0].mxu0
      %v2393 = vadd.f32 %v2232, %v2392
      %v2394 = vpop.f32.mrb[0].mxu0
      %v2395 = vpop.f32.mrb[0].mxu0
      %v2396 = vadd.f32 %v2235, %v2395
      %v2397 = vpop.f32.mrb[0].mxu0
      %2398 = vmatprep.mubr.bf16.mxu0 %v1876
      %2399 = vmatmul.mubr.bf16.gmra.mrb[0].mxu0 %v1875
      %v2400 = vpop.f32.mrb[0].mxu0
      %v2401 = vadd.f32 %v2240, %v2400
      %v2402 = vpop.f32.mrb[0].mxu0
      %v2403 = vpop.f32.mrb[0].mxu0
      %v2404 = vadd.f32 %v2243, %v2403
      %v2405 = vpop.f32.mrb[0].mxu0
      %2406 = vmatprep.mubr.bf16.mxu0 %v1880
      %2407 = vmatmul.mubr.bf16.gmra.mrb[0].mxu0 %v1879
      %v2408 = vpop.f32.mrb[0].mxu0
      %v2409 = vadd.f32 %v2248, %v2408
      %v2410 = vpop.f32.mrb[0].mxu0
      %v2411 = vpop.f32.mrb[0].mxu0
      %v2412 = vadd.f32 %v2251, %v2411
      %v2413 = vpop.f32.mrb[0].mxu0
      %2414 = vmatprep.mubr.bf16.mxu0 %v1884
      %2415 = vmatmul.mubr.bf16.gmra.mrb[0].mxu0 %v1883
      %v2416 = vpop.f32.mrb[0].mxu0
      %v2417 = vadd.f32 %v2256, %v2416
      %v2418 = vpop.f32.mrb[0].mxu0
      %v2419 = vpop.f32.mrb[0].mxu0
      %v2420 = vadd.f32 %v2259, %v2419
      %v2421 = vpop.f32.mrb[0].mxu0
      %2422 = vmatprep.mubr.bf16.mxu0 %v1888
      %2423 = vmatmul.mubr.bf16.gmra.mrb[0].mxu0 %v1887
      %v2424 = vpop.f32.mrb[0].mxu0
      %v2425 = vadd.f32 %v2264, %v2424
      %v2426 = vpop.f32.mrb[0].mxu0
      %v2427 = vpop.f32.mrb[0].mxu0
      %v2428 = vadd.f32 %v2267, %v2427
      %v2429 = vpop.f32.mrb[0].mxu0
      %2430 = vmatprep.mubr.bf16.mxu0 %v1892
      %2431 = vmatmul.mubr.bf16.gmra.mrb[0].mxu0 %v1891
      %v2432 = vpop.f32.mrb[0].mxu0
      %v2433 = vadd.f32 %v2272, %v2432
      %v2434 = vpop.f32.mrb[0].mxu0
      %v2435 = vpop.f32.mrb[0].mxu0
      %v2436 = vadd.f32 %v2275, %v2435
      %v2437 = vpop.f32.mrb[0].mxu0
      %2438 = vmatprep.mubr.bf16.mxu0 %v1896
      %2439 = vmatmul.mubr.bf16.gmra.mrb[0].mxu0 %v1895
      %v2440 = vpop.f32.mrb[0].mxu0
      %v2441 = vadd.f32 %v2280, %v2440
      %v2442 = vpop.f32.mrb[0].mxu0
      %v2443 = vpop.f32.mrb[0].mxu0
      %v2444 = vadd.f32 %v2283, %v2443
      %v2445 = vpop.f32.mrb[0].mxu0
      %2446 = vmatprep.mubr.bf16.mxu0 %v1900
      %2447 = vmatmul.mubr.bf16.gmra.mrb[0].mxu0 %v1899
      %v2448 = vpop.f32.mrb[0].mxu0
      %v2449 = vadd.f32 %v2288, %v2448
      %v2450 = vpop.f32.mrb[0].mxu0
      %v2451 = vpop.f32.mrb[0].mxu0
      %v2452 = vadd.f32 %v2291, %v2451
      %v2453 = vpop.f32.mrb[0].mxu0
      %2454 = vmatprep.mubr.bf16.mxu0 %v1904
      %2455 = vmatmul.mubr.bf16.gmra.mrb[0].mxu0 %v1903
      %v2456 = vpop.f32.mrb[0].mxu0
      %v2457 = vadd.f32 %v2296, %v2456
      %v2458 = vpop.f32.mrb[0].mxu0
      %v2459 = vpop.f32.mrb[0].mxu0
      %v2460 = vadd.f32 %v2299, %v2459
      %v2461 = vpop.f32.mrb[0].mxu0
      %2462 = vmatprep.mubr.bf16.mxu0 %v1908
      %2463 = vmatmul.mubr.bf16.gmra.mrb[0].mxu0 %v1907
      %v2464 = vpop.f32.mrb[0].mxu0
      %v2465 = vadd.f32 %v2304, %v2464
      %v2466 = vpop.f32.mrb[0].mxu0
      %v2467 = vpop.f32.mrb[0].mxu0
      %v2468 = vadd.f32 %v2307, %v2467
      %v2469 = vpop.f32.mrb[0].mxu0
      %2470 = vmatprep.mubr.bf16.mxu0 %v1912
      %2471 = vmatmul.mubr.bf16.gmra.mrb[0].mxu0 %v1911
      %v2472 = vpop.f32.mrb[0].mxu0
      %v2473 = vadd.f32 %v2312, %v2472
      %v2474 = vpop.f32.mrb[0].mxu0
      %v2475 = vpop.f32.mrb[0].mxu0
      %v2476 = vadd.f32 %v2315, %v2475
      %v2477 = vpop.f32.mrb[0].mxu0
      %2478 = vmatprep.mubr.bf16.mxu0 %v1916
      %2479 = vmatmul.mubr.bf16.gmra.mrb[0].mxu0 %v1915
      %v2480 = vpop.f32.mrb[0].mxu0
      %v2481 = vadd.f32 %v2320, %v2480
      %v2482 = vpop.f32.mrb[0].mxu0
      %v2483 = vpop.f32.mrb[0].mxu0
      %v2484 = vadd.f32 %v2323, %v2483
      %v2485 = vpop.f32.mrb[0].mxu0
      %2486 = vmatprep.mubr.bf16.mxu0 %v1920
      %2487 = vmatmul.mubr.bf16.gmra.mrb[0].mxu0 %v1919
      %v2488 = vpop.f32.mrb[0].mxu0
      %v2489 = vadd.f32 %v2328, %v2488
      %v2490 = vpop.f32.mrb[0].mxu0
      %v2491 = vpop.f32.mrb[0].mxu0
      %v2492 = vadd.f32 %v2331, %v2491
      %v2493 = vpop.f32.mrb[0].mxu0
      %2494 = vmatprep.mubr.bf16.mxu0 %v1924
      %2495 = vmatmul.mubr.bf16.gmra.mrb[0].mxu0 %v1923
      %v2496 = vpop.f32.mrb[0].mxu0
      %v2497 = vadd.f32 %v2336, %v2496
      %v2498 = vpop.f32.mrb[0].mxu0
      %v2499 = vpop.f32.mrb[0].mxu0
      %v2500 = vadd.f32 %v2339, %v2499
      %v2501 = vpop.f32.mrb[0].mxu0
      %2502 = vdwg.mxu0
      %v2567 = vunpack.c.l.b16 %v1069
      %v2568 = vunpack.c.l.b16 %v1070
      %v2569 = vunpack.c.l.b16 %v1071
      %v2570 = vunpack.c.l.b16 %v1072
      %v2571 = vunpack.c.l.b16 %v1073
      %v2572 = vunpack.c.l.b16 %v1074
      %v2573 = vunpack.c.l.b16 %v1075
      %v2574 = vunpack.c.l.b16 %v1076
      %v2575 = vunpack.c.l.b16 %v1077
      %v2576 = vunpack.c.l.b16 %v1078
      %v2577 = vunpack.c.l.b16 %v1079
      %v2578 = vunpack.c.l.b16 %v1080
      %v2579 = vunpack.c.l.b16 %v1081
      %v2580 = vunpack.c.l.b16 %v1082
      %v2581 = vunpack.c.l.b16 %v1083
      %v2582 = vunpack.c.l.b16 %v1084
      %v2583 = vunpack.c.l.b16 %v1085
      %v2584 = vunpack.c.l.b16 %v1086
      %v2585 = vunpack.c.l.b16 %v1087
      %v2586 = vunpack.c.l.b16 %v1088
      %v2587 = vunpack.c.l.b16 %v1089
      %v2588 = vunpack.c.l.b16 %v1090
      %v2589 = vunpack.c.l.b16 %v1091
      %v2590 = vunpack.c.l.b16 %v1092
      %v2591 = vunpack.c.l.b16 %v1093
      %v2592 = vunpack.c.l.b16 %v1094
      %v2593 = vunpack.c.l.b16 %v1095
      %v2594 = vunpack.c.l.b16 %v1096
      %v2595 = vunpack.c.l.b16 %v1097
      %v2596 = vunpack.c.l.b16 %v1098
      %v2597 = vunpack.c.l.b16 %v1099
      %v2598 = vunpack.c.l.b16 %v1100
      %v2599 = vunpack.c.l.b16 %v1101
      %v2600 = vunpack.c.l.b16 %v1102
      %v2601 = vunpack.c.l.b16 %v1103
      %v2602 = vunpack.c.l.b16 %v1104
      %v2603 = vunpack.c.l.b16 %v1105
      %v2604 = vunpack.c.l.b16 %v1106
      %v2605 = vunpack.c.l.b16 %v1107
      %v2606 = vunpack.c.l.b16 %v1108
      %v2607 = vunpack.c.l.b16 %v1109
      %v2608 = vunpack.c.l.b16 %v1110
      %v2609 = vunpack.c.l.b16 %v1111
      %v2610 = vunpack.c.l.b16 %v1112
      %v2611 = vunpack.c.l.b16 %v1113
      %v2612 = vunpack.c.l.b16 %v1114
      %v2613 = vunpack.c.l.b16 %v1115
      %v2614 = vunpack.c.l.b16 %v1116
      %v2615 = vunpack.c.l.b16 %v1117
      %v2616 = vunpack.c.l.b16 %v1118
      %v2617 = vunpack.c.l.b16 %v1119
      %v2618 = vunpack.c.l.b16 %v1120
      %v2619 = vunpack.c.l.b16 %v1121
      %v2620 = vunpack.c.l.b16 %v1122
      %v2621 = vunpack.c.l.b16 %v1123
      %v2622 = vunpack.c.l.b16 %v1124
      %v2623 = vunpack.c.l.b16 %v1125
      %v2624 = vunpack.c.l.b16 %v1126
      %v2625 = vunpack.c.l.b16 %v1127
      %v2626 = vunpack.c.l.b16 %v1128
      %v2627 = vunpack.c.l.b16 %v1129
      %v2628 = vunpack.c.l.b16 %v1130
      %v2629 = vunpack.c.l.b16 %v1131
      %v2630 = vunpack.c.l.b16 %v1132
      %v2631 = vpack.c.b16 %v2568, %v2567
      %v2632 = vpack.c.b16 %v2570, %v2569
      %v2633 = vpack.c.b16 %v2572, %v2571
      %v2634 = vpack.c.b16 %v2574, %v2573
      %v2635 = vpack.c.b16 %v2576, %v2575
      %v2636 = vpack.c.b16 %v2578, %v2577
      %v2637 = vpack.c.b16 %v2580, %v2579
      %v2638 = vpack.c.b16 %v2582, %v2581
      %v2639 = vpack.c.b16 %v2584, %v2583
      %v2640 = vpack.c.b16 %v2586, %v2585
      %v2641 = vpack.c.b16 %v2588, %v2587
      %v2642 = vpack.c.b16 %v2590, %v2589
      %v2643 = vpack.c.b16 %v2592, %v2591
      %v2644 = vpack.c.b16 %v2594, %v2593
      %v2645 = vpack.c.b16 %v2596, %v2595
      %v2646 = vpack.c.b16 %v2598, %v2597
      %v2647 = vpack.c.b16 %v2600, %v2599
      %v2648 = vpack.c.b16 %v2602, %v2601
      %v2649 = vpack.c.b16 %v2604, %v2603
      %v2650 = vpack.c.b16 %v2606, %v2605
      %v2651 = vpack.c.b16 %v2608, %v2607
      %v2652 = vpack.c.b16 %v2610, %v2609
      %v2653 = vpack.c.b16 %v2612, %v2611
      %v2654 = vpack.c.b16 %v2614, %v2613
      %v2655 = vpack.c.b16 %v2616, %v2615
      %v2656 = vpack.c.b16 %v2618, %v2617
      %v2657 = vpack.c.b16 %v2620, %v2619
      %v2658 = vpack.c.b16 %v2622, %v2621
      %v2659 = vpack.c.b16 %v2624, %v2623
      %v2660 = vpack.c.b16 %v2626, %v2625
      %v2661 = vpack.c.b16 %v2628, %v2627
      %v2662 = vpack.c.b16 %v2630, %v2629
      %2695 = vmatprep.subr.bf16.mxu0 0
      %2696 = vmatpush1.bf16.msra.mxu0 %v2631
      %2697 = vmatprep.subr.bf16.mxu0 0
      %2698 = vmatpush1.bf16.msra.mxu0 %v2632
      %2699 = vmatprep.subr.bf16.mxu0 0
      %2700 = vmatpush1.bf16.msra.mxu0 %v2633
      %2701 = vmatprep.subr.bf16.mxu0 0
      %2702 = vmatpush1.bf16.msra.mxu0 %v2634
      %2703 = vmatprep.subr.bf16.mxu0 0
      %2704 = vmatpush1.bf16.msra.mxu0 %v2635
      %2705 = vmatprep.subr.bf16.mxu0 0
      %2706 = vmatpush1.bf16.msra.mxu0 %v2636
      %2707 = vmatprep.subr.bf16.mxu0 0
      %2708 = vmatpush1.bf16.msra.mxu0 %v2637
      %2709 = vmatprep.subr.bf16.mxu0 0
      %2710 = vmatpush1.bf16.msra.mxu0 %v2638
      %2711 = vmatprep.subr.bf16.mxu0 0
      %2712 = vmatpush1.bf16.msra.mxu0 %v2639
      %2713 = vmatprep.subr.bf16.mxu0 0
      %2714 = vmatpush1.bf16.msra.mxu0 %v2640
      %2715 = vmatprep.subr.bf16.mxu0 0
      %2716 = vmatpush1.bf16.msra.mxu0 %v2641
      %2717 = vmatprep.subr.bf16.mxu0 0
      %2718 = vmatpush1.bf16.msra.mxu0 %v2642
      %2719 = vmatprep.subr.bf16.mxu0 0
      %2720 = vmatpush1.bf16.msra.mxu0 %v2643
      %2721 = vmatprep.subr.bf16.mxu0 0
      %2722 = vmatpush1.bf16.msra.mxu0 %v2644
      %2723 = vmatprep.subr.bf16.mxu0 0
      %2724 = vmatpush1.bf16.msra.mxu0 %v2645
      %2725 = vmatprep.subr.bf16.mxu0 0
      %2726 = vmatpush1.bf16.msra.mxu0 %v2646
      %2727 = vmatprep.mubr.bf16.mxu0 %v1006
      %2728 = vmatmul.mubr.bf16.gmra.mrb[0].mxu0 %v1005
      %v2729 = vpop.f32.mrb[0].mxu0
      %v2730 = vadd.f32 %v2377, %v2729
      %v2731 = vpop.f32.mrb[0].mxu0
      %v2732 = vpop.f32.mrb[0].mxu0
      %v2733 = vadd.f32 %v2380, %v2732
      %v2734 = vpop.f32.mrb[0].mxu0
      %2735 = vmatprep.mubr.bf16.mxu0 %v1010
      %2736 = vmatmul.mubr.bf16.gmra.mrb[0].mxu0 %v1009
      %v2737 = vpop.f32.mrb[0].mxu0
      %v2738 = vadd.f32 %v2385, %v2737
      %v2739 = vpop.f32.mrb[0].mxu0
      %v2740 = vpop.f32.mrb[0].mxu0
      %v2741 = vadd.f32 %v2388, %v2740
      %v2742 = vpop.f32.mrb[0].mxu0
      %2743 = vmatprep.mubr.bf16.mxu0 %v1014
      %2744 = vmatmul.mubr.bf16.gmra.mrb[0].mxu0 %v1013
      %v2745 = vpop.f32.mrb[0].mxu0
      %v2746 = vadd.f32 %v2393, %v2745
      %v2747 = vpop.f32.mrb[0].mxu0
      %v2748 = vpop.f32.mrb[0].mxu0
      %v2749 = vadd.f32 %v2396, %v2748
      %v2750 = vpop.f32.mrb[0].mxu0
      %2751 = vmatprep.mubr.bf16.mxu0 %v1018
      %2752 = vmatmul.mubr.bf16.gmra.mrb[0].mxu0 %v1017
      %v2753 = vpop.f32.mrb[0].mxu0
      %v2754 = vadd.f32 %v2401, %v2753
      %v2755 = vpop.f32.mrb[0].mxu0
      %v2756 = vpop.f32.mrb[0].mxu0
      %v2757 = vadd.f32 %v2404, %v2756
      %v2758 = vpop.f32.mrb[0].mxu0
      %2759 = vmatprep.mubr.bf16.mxu0 %v1022
      %2760 = vmatmul.mubr.bf16.gmra.mrb[0].mxu0 %v1021
      %v2761 = vpop.f32.mrb[0].mxu0
      %v2762 = vadd.f32 %v2409, %v2761
      %v2763 = vpop.f32.mrb[0].mxu0
      %v2764 = vpop.f32.mrb[0].mxu0
      %v2765 = vadd.f32 %v2412, %v2764
      %v2766 = vpop.f32.mrb[0].mxu0
      %2767 = vmatprep.mubr.bf16.mxu0 %v1026
      %2768 = vmatmul.mubr.bf16.gmra.mrb[0].mxu0 %v1025
      %v2769 = vpop.f32.mrb[0].mxu0
      %v2770 = vadd.f32 %v2417, %v2769
      %v2771 = vpop.f32.mrb[0].mxu0
      %v2772 = vpop.f32.mrb[0].mxu0
      %v2773 = vadd.f32 %v2420, %v2772
      %v2774 = vpop.f32.mrb[0].mxu0
      %2775 = vmatprep.mubr.bf16.mxu0 %v1030
      %2776 = vmatmul.mubr.bf16.gmra.mrb[0].mxu0 %v1029
      %v2777 = vpop.f32.mrb[0].mxu0
      %v2778 = vadd.f32 %v2425, %v2777
      %v2779 = vpop.f32.mrb[0].mxu0
      %v2780 = vpop.f32.mrb[0].mxu0
      %v2781 = vadd.f32 %v2428, %v2780
      %v2782 = vpop.f32.mrb[0].mxu0
      %2783 = vmatprep.mubr.bf16.mxu0 %v1034
      %2784 = vmatmul.mubr.bf16.gmra.mrb[0].mxu0 %v1033
      %v2785 = vpop.f32.mrb[0].mxu0
      %v2786 = vadd.f32 %v2433, %v2785
      %v2787 = vpop.f32.mrb[0].mxu0
      %v2788 = vpop.f32.mrb[0].mxu0
      %v2789 = vadd.f32 %v2436, %v2788
      %v2790 = vpop.f32.mrb[0].mxu0
      %2791 = vmatprep.mubr.bf16.mxu0 %v1038
      %2792 = vmatmul.mubr.bf16.gmra.mrb[0].mxu0 %v1037
      %v2793 = vpop.f32.mrb[0].mxu0
      %v2794 = vadd.f32 %v2441, %v2793
      %v2795 = vpop.f32.mrb[0].mxu0
      %v2796 = vpop.f32.mrb[0].mxu0
      %v2797 = vadd.f32 %v2444, %v2796
      %v2798 = vpop.f32.mrb[0].mxu0
      %2799 = vmatprep.mubr.bf16.mxu0 %v1042
      %2800 = vmatmul.mubr.bf16.gmra.mrb[0].mxu0 %v1041
      %v2801 = vpop.f32.mrb[0].mxu0
      %v2802 = vadd.f32 %v2449, %v2801
      %v2803 = vpop.f32.mrb[0].mxu0
      %v2804 = vpop.f32.mrb[0].mxu0
      %v2805 = vadd.f32 %v2452, %v2804
      %v2806 = vpop.f32.mrb[0].mxu0
      %2807 = vmatprep.mubr.bf16.mxu0 %v1046
      %2808 = vmatmul.mubr.bf16.gmra.mrb[0].mxu0 %v1045
      %v2809 = vpop.f32.mrb[0].mxu0
      %v2810 = vadd.f32 %v2457, %v2809
      %v2811 = vpop.f32.mrb[0].mxu0
      %v2812 = vpop.f32.mrb[0].mxu0
      %v2813 = vadd.f32 %v2460, %v2812
      %v2814 = vpop.f32.mrb[0].mxu0
      %2815 = vmatprep.mubr.bf16.mxu0 %v1050
      %2816 = vmatmul.mubr.bf16.gmra.mrb[0].mxu0 %v1049
      %v2817 = vpop.f32.mrb[0].mxu0
      %v2818 = vadd.f32 %v2465, %v2817
      %v2819 = vpop.f32.mrb[0].mxu0
      %v2820 = vpop.f32.mrb[0].mxu0
      %v2821 = vadd.f32 %v2468, %v2820
      %v2822 = vpop.f32.mrb[0].mxu0
      %2823 = vmatprep.mubr.bf16.mxu0 %v1054
      %2824 = vmatmul.mubr.bf16.gmra.mrb[0].mxu0 %v1053
      %v2825 = vpop.f32.mrb[0].mxu0
      %v2826 = vadd.f32 %v2473, %v2825
      %v2827 = vpop.f32.mrb[0].mxu0
      %v2828 = vpop.f32.mrb[0].mxu0
      %v2829 = vadd.f32 %v2476, %v2828
      %v2830 = vpop.f32.mrb[0].mxu0
      %2831 = vmatprep.mubr.bf16.mxu0 %v1058
      %2832 = vmatmul.mubr.bf16.gmra.mrb[0].mxu0 %v1057
      %v2833 = vpop.f32.mrb[0].mxu0
      %v2834 = vadd.f32 %v2481, %v2833
      %v2835 = vpop.f32.mrb[0].mxu0
      %v2836 = vpop.f32.mrb[0].mxu0
      %v2837 = vadd.f32 %v2484, %v2836
      %v2838 = vpop.f32.mrb[0].mxu0
      %2839 = vmatprep.mubr.bf16.mxu0 %v1062
      %2840 = vmatmul.mubr.bf16.gmra.mrb[0].mxu0 %v1061
      %v2841 = vpop.f32.mrb[0].mxu0
      %v2842 = vadd.f32 %v2489, %v2841
      %v2843 = vpop.f32.mrb[0].mxu0
      %v2844 = vpop.f32.mrb[0].mxu0
      %v2845 = vadd.f32 %v2492, %v2844
      %v2846 = vpop.f32.mrb[0].mxu0
      %2847 = vmatprep.mubr.bf16.mxu0 %v1066
      %2848 = vmatmul.mubr.bf16.gmra.mrb[0].mxu0 %v1065
      %v2849 = vpop.f32.mrb[0].mxu0
      %v2850 = vadd.f32 %v2497, %v2849
      %v2851 = vpop.f32.mrb[0].mxu0
      %v2852 = vpop.f32.mrb[0].mxu0
      %v2853 = vadd.f32 %v2500, %v2852
      %v2854 = vpop.f32.mrb[0].mxu0
      %2855 = vdwg.mxu0
      %2856 = vmatprep.subr.bf16.mxu0 0
      %2857 = vmatpush1.bf16.msra.mxu0 %v2647
      %2858 = vmatprep.subr.bf16.mxu0 0
      %2859 = vmatpush1.bf16.msra.mxu0 %v2648
      %2860 = vmatprep.subr.bf16.mxu0 0
      %2861 = vmatpush1.bf16.msra.mxu0 %v2649
      %2862 = vmatprep.subr.bf16.mxu0 0
      %2863 = vmatpush1.bf16.msra.mxu0 %v2650
      %2864 = vmatprep.subr.bf16.mxu0 0
      %2865 = vmatpush1.bf16.msra.mxu0 %v2651
      %2866 = vmatprep.subr.bf16.mxu0 0
      %2867 = vmatpush1.bf16.msra.mxu0 %v2652
      %2868 = vmatprep.subr.bf16.mxu0 0
      %2869 = vmatpush1.bf16.msra.mxu0 %v2653
      %2870 = vmatprep.subr.bf16.mxu0 0
      %2871 = vmatpush1.bf16.msra.mxu0 %v2654
      %2872 = vmatprep.subr.bf16.mxu0 0
      %2873 = vmatpush1.bf16.msra.mxu0 %v2655
      %2874 = vmatprep.subr.bf16.mxu0 0
      %2875 = vmatpush1.bf16.msra.mxu0 %v2656
      %2876 = vmatprep.subr.bf16.mxu0 0
      %2877 = vmatpush1.bf16.msra.mxu0 %v2657
      %2878 = vmatprep.subr.bf16.mxu0 0
      %2879 = vmatpush1.bf16.msra.mxu0 %v2658
      %2880 = vmatprep.subr.bf16.mxu0 0
      %2881 = vmatpush1.bf16.msra.mxu0 %v2659
      %2882 = vmatprep.subr.bf16.mxu0 0
      %2883 = vmatpush1.bf16.msra.mxu0 %v2660
      %2884 = vmatprep.subr.bf16.mxu0 0
      %2885 = vmatpush1.bf16.msra.mxu0 %v2661
      %2886 = vmatprep.subr.bf16.mxu0 0
      %2887 = vmatpush1.bf16.msra.mxu0 %v2662
      %2888 = vmatprep.mubr.bf16.mxu0 %v1008
      %2889 = vmatmul.mubr.bf16.gmra.mrb[0].mxu0 %v1007
      %v2890 = vpop.f32.mrb[0].mxu0
      %v2891 = vadd.f32 %v2730, %v2890
      %v2892 = vpop.f32.mrb[0].mxu0
      %v2893 = vpop.f32.mrb[0].mxu0
      %v2894 = vadd.f32 %v2733, %v2893
      %v2895 = vpop.f32.mrb[0].mxu0
      %2896 = vmatprep.mubr.bf16.mxu0 %v1012
      %2897 = vmatmul.mubr.bf16.gmra.mrb[0].mxu0 %v1011
      %v2898 = vpop.f32.mrb[0].mxu0
      %v2899 = vadd.f32 %v2738, %v2898
      %v2900 = vpop.f32.mrb[0].mxu0
      %v2901 = vpop.f32.mrb[0].mxu0
      %v2902 = vadd.f32 %v2741, %v2901
      %v2903 = vpop.f32.mrb[0].mxu0
      %2904 = vmatprep.mubr.bf16.mxu0 %v1016
      %2905 = vmatmul.mubr.bf16.gmra.mrb[0].mxu0 %v1015
      %v2906 = vpop.f32.mrb[0].mxu0
      %v2907 = vadd.f32 %v2746, %v2906
      %v2908 = vpop.f32.mrb[0].mxu0
      %v2909 = vpop.f32.mrb[0].mxu0
      %v2910 = vadd.f32 %v2749, %v2909
      %v2911 = vpop.f32.mrb[0].mxu0
      %2912 = vmatprep.mubr.bf16.mxu0 %v1020
      %2913 = vmatmul.mubr.bf16.gmra.mrb[0].mxu0 %v1019
      %v2914 = vpop.f32.mrb[0].mxu0
      %v2915 = vadd.f32 %v2754, %v2914
      %v2916 = vpop.f32.mrb[0].mxu0
      %v2917 = vpop.f32.mrb[0].mxu0
      %v2918 = vadd.f32 %v2757, %v2917
      %v2919 = vpop.f32.mrb[0].mxu0
      %2920 = vmatprep.mubr.bf16.mxu0 %v1024
      %2921 = vmatmul.mubr.bf16.gmra.mrb[0].mxu0 %v1023
      %v2922 = vpop.f32.mrb[0].mxu0
      %v2923 = vadd.f32 %v2762, %v2922
      %v2924 = vpop.f32.mrb[0].mxu0
      %v2925 = vpop.f32.mrb[0].mxu0
      %v2926 = vadd.f32 %v2765, %v2925
      %v2927 = vpop.f32.mrb[0].mxu0
      %2928 = vmatprep.mubr.bf16.mxu0 %v1028
      %2929 = vmatmul.mubr.bf16.gmra.mrb[0].mxu0 %v1027
      %v2930 = vpop.f32.mrb[0].mxu0
      %v2931 = vadd.f32 %v2770, %v2930
      %v2932 = vpop.f32.mrb[0].mxu0
      %v2933 = vpop.f32.mrb[0].mxu0
      %v2934 = vadd.f32 %v2773, %v2933
      %v2935 = vpop.f32.mrb[0].mxu0
      %2936 = vmatprep.mubr.bf16.mxu0 %v1032
      %2937 = vmatmul.mubr.bf16.gmra.mrb[0].mxu0 %v1031
      %v2938 = vpop.f32.mrb[0].mxu0
      %v2939 = vadd.f32 %v2778, %v2938
      %v2940 = vpop.f32.mrb[0].mxu0
      %v2941 = vpop.f32.mrb[0].mxu0
      %v2942 = vadd.f32 %v2781, %v2941
      %v2943 = vpop.f32.mrb[0].mxu0
      %2944 = vmatprep.mubr.bf16.mxu0 %v1036
      %2945 = vmatmul.mubr.bf16.gmra.mrb[0].mxu0 %v1035
      %v2946 = vpop.f32.mrb[0].mxu0
      %v2947 = vadd.f32 %v2786, %v2946
      %v2948 = vpop.f32.mrb[0].mxu0
      %v2949 = vpop.f32.mrb[0].mxu0
      %v2950 = vadd.f32 %v2789, %v2949
      %v2951 = vpop.f32.mrb[0].mxu0
      %2952 = vmatprep.mubr.bf16.mxu0 %v1040
      %2953 = vmatmul.mubr.bf16.gmra.mrb[0].mxu0 %v1039
      %v2954 = vpop.f32.mrb[0].mxu0
      %v2955 = vadd.f32 %v2794, %v2954
      %v2956 = vpop.f32.mrb[0].mxu0
      %v2957 = vpop.f32.mrb[0].mxu0
      %v2958 = vadd.f32 %v2797, %v2957
      %v2959 = vpop.f32.mrb[0].mxu0
      %2960 = vmatprep.mubr.bf16.mxu0 %v1044
      %2961 = vmatmul.mubr.bf16.gmra.mrb[0].mxu0 %v1043
      %v2962 = vpop.f32.mrb[0].mxu0
      %v2963 = vadd.f32 %v2802, %v2962
      %v2964 = vpop.f32.mrb[0].mxu0
      %v2965 = vpop.f32.mrb[0].mxu0
      %v2966 = vadd.f32 %v2805, %v2965
      %v2967 = vpop.f32.mrb[0].mxu0
      %2968 = vmatprep.mubr.bf16.mxu0 %v1048
      %2969 = vmatmul.mubr.bf16.gmra.mrb[0].mxu0 %v1047
      %v2970 = vpop.f32.mrb[0].mxu0
      %v2971 = vadd.f32 %v2810, %v2970
      %v2972 = vpop.f32.mrb[0].mxu0
      %v2973 = vpop.f32.mrb[0].mxu0
      %v2974 = vadd.f32 %v2813, %v2973
      %v2975 = vpop.f32.mrb[0].mxu0
      %2976 = vmatprep.mubr.bf16.mxu0 %v1052
      %2977 = vmatmul.mubr.bf16.gmra.mrb[0].mxu0 %v1051
      %v2978 = vpop.f32.mrb[0].mxu0
      %v2979 = vadd.f32 %v2818, %v2978
      %v2980 = vpop.f32.mrb[0].mxu0
      %v2981 = vpop.f32.mrb[0].mxu0
      %v2982 = vadd.f32 %v2821, %v2981
      %v2983 = vpop.f32.mrb[0].mxu0
      %2984 = vmatprep.mubr.bf16.mxu0 %v1056
      %2985 = vmatmul.mubr.bf16.gmra.mrb[0].mxu0 %v1055
      %v2986 = vpop.f32.mrb[0].mxu0
      %v2987 = vadd.f32 %v2826, %v2986
      %v2988 = vpop.f32.mrb[0].mxu0
      %v2989 = vpop.f32.mrb[0].mxu0
      %v2990 = vadd.f32 %v2829, %v2989
      %v2991 = vpop.f32.mrb[0].mxu0
      %2992 = vmatprep.mubr.bf16.mxu0 %v1060
      %2993 = vmatmul.mubr.bf16.gmra.mrb[0].mxu0 %v1059
      %v2994 = vpop.f32.mrb[0].mxu0
      %v2995 = vadd.f32 %v2834, %v2994
      %v2996 = vpop.f32.mrb[0].mxu0
      %v2997 = vpop.f32.mrb[0].mxu0
      %v2998 = vadd.f32 %v2837, %v2997
      %v2999 = vpop.f32.mrb[0].mxu0
      %3000 = vmatprep.mubr.bf16.mxu0 %v1064
      %3001 = vmatmul.mubr.bf16.gmra.mrb[0].mxu0 %v1063
      %v3002 = vpop.f32.mrb[0].mxu0
      %v3003 = vadd.f32 %v2842, %v3002
      %v3004 = vpop.f32.mrb[0].mxu0
      %v3005 = vpop.f32.mrb[0].mxu0
      %v3006 = vadd.f32 %v2845, %v3005
      %v3007 = vpop.f32.mrb[0].mxu0
      %3008 = vmatprep.mubr.bf16.mxu0 %v1068
      %3009 = vmatmul.mubr.bf16.gmra.mrb[0].mxu0 %v1067
      %v3010 = vpop.f32.mrb[0].mxu0
      %v3011 = vadd.f32 %v2850, %v3010
      %v3012 = vpop.f32.mrb[0].mxu0
      %v3013 = vpop.f32.mrb[0].mxu0
      %v3014 = vadd.f32 %v2853, %v3013
      %v3015 = vpop.f32.mrb[0].mxu0
      %3016 = vdwg.mxu0
      %v3017 = vld [vmem:[%s4] sm:$0x1]
      %v3019 = vlaneseq
      %v3020 = vshrl.u32 %v3019, 7
      %v3021 = vsub.s32 0, %v3020
      %v3022 = vrot.slane %v3017, %v3021
      %v3024 = vadd.f32 %v2891, %v3022
      %v3025 = vadd.f32 %v2894, %v3022
      %v3026 = vadd.f32 %v2899, %v3022
      %v3027 = vadd.f32 %v2902, %v3022
      %v3028 = vadd.f32 %v2907, %v3022
      %v3029 = vadd.f32 %v2910, %v3022
      %v3030 = vadd.f32 %v2915, %v3022
      %v3031 = vadd.f32 %v2918, %v3022
      %v3032 = vadd.f32 %v2923, %v3022
      %v3033 = vadd.f32 %v2926, %v3022
      %v3034 = vadd.f32 %v2931, %v3022
      %v3035 = vadd.f32 %v2934, %v3022
      %v3036 = vadd.f32 %v2939, %v3022
      %v3037 = vadd.f32 %v2942, %v3022
      %v3038 = vadd.f32 %v2947, %v3022
      %v3039 = vadd.f32 %v2950, %v3022
      %v3040 = vadd.f32 %v2955, %v3022
      %v3041 = vadd.f32 %v2958, %v3022
      %v3042 = vadd.f32 %v2963, %v3022
      %v3043 = vadd.f32 %v2966, %v3022
      %v3044 = vadd.f32 %v2971, %v3022
      %v3045 = vadd.f32 %v2974, %v3022
      %v3046 = vadd.f32 %v2979, %v3022
      %v3047 = vadd.f32 %v2982, %v3022
      %v3048 = vadd.f32 %v2987, %v3022
      %v3049 = vadd.f32 %v2990, %v3022
      %v3050 = vadd.f32 %v2995, %v3022
      %v3051 = vadd.f32 %v2998, %v3022
      %v3052 = vadd.f32 %v3003, %v3022
      %v3053 = vadd.f32 %v3006, %v3022
      %v3054 = vadd.f32 %v3011, %v3022
      %v3055 = vadd.f32 %v3014, %v3022
      %3056 = vst [vmem:[%s226] sm:$0xff] %v3024
      %3057 = vst [vmem:[%s226 + $0x8] sm:$0xff] %v3025
      %3058 = vst [vmem:[%s226 + $0x10] sm:$0xff] %v3026
      %3059 = vst [vmem:[%s226 + $0x18] sm:$0xff] %v3027
      %3060 = vst [vmem:[%s226 + $0x20] sm:$0xff] %v3028
      %3061 = vst [vmem:[%s226 + $0x28] sm:$0xff] %v3029
      %3062 = vst [vmem:[%s226 + $0x30] sm:$0xff] %v3030
      %3063 = vst [vmem:[%s226 + $0x38] sm:$0xff] %v3031
      %3064 = vst [vmem:[%s226 + $0x40] sm:$0xff] %v3032
      %3065 = vst [vmem:[%s226 + $0x48] sm:$0xff] %v3033
      %3066 = vst [vmem:[%s226 + $0x50] sm:$0xff] %v3034
      %3067 = vst [vmem:[%s226 + $0x58] sm:$0xff] %v3035
      %3068 = vst [vmem:[%s226 + $0x60] sm:$0xff] %v3036
      %3069 = vst [vmem:[%s226 + $0x68] sm:$0xff] %v3037
      %3070 = vst [vmem:[%s226 + $0x70] sm:$0xff] %v3038
      %3071 = vst [vmem:[%s226 + $0x78] sm:$0xff] %v3039
      %3072 = vst [vmem:[%s226 + $0x80] sm:$0xff] %v3040
      %3073 = vst [vmem:[%s226 + $0x88] sm:$0xff] %v3041
      %3074 = vst [vmem:[%s226 + $0x90] sm:$0xff] %v3042
      %3075 = vst [vmem:[%s226 + $0x98] sm:$0xff] %v3043
      %3076 = vst [vmem:[%s226 + $0xa0] sm:$0xff] %v3044
      %3077 = vst [vmem:[%s226 + $0xa8] sm:$0xff] %v3045
      %3078 = vst [vmem:[%s226 + $0xb0] sm:$0xff] %v3046
      %3079 = vst [vmem:[%s226 + $0xb8] sm:$0xff] %v3047
      %3080 = vst [vmem:[%s226 + $0xc0] sm:$0xff] %v3048
      %3081 = vst [vmem:[%s226 + $0xc8] sm:$0xff] %v3049
      %3082 = vst [vmem:[%s226 + $0xd0] sm:$0xff] %v3050
      %3083 = vst [vmem:[%s226 + $0xd8] sm:$0xff] %v3051
      %3084 = vst [vmem:[%s226 + $0xe0] sm:$0xff] %v3052
      %3085 = vst [vmem:[%s226 + $0xe8] sm:$0xff] %v3053
      %3086 = vst [vmem:[%s226 + $0xf0] sm:$0xff] %v3054
      %3087 = vst [vmem:[%s226 + $0xf8] sm:$0xff] %v3055
      %s3088 = smul.u32 32, %s16
      %p3089 = scmp.lt.s32.totalorder %s3088, 63
      %s3090 = scalar_select %p3089, %s3088, 63
      %s3091 = smul.addr %s3090, 8
      %s3092 = scalar_lea.vmem %s5, %s3091
      // Predicated region
      $region41: #{token_receiver.1} parent=39 // pred_check
        %p3093 = pneg %p144
      $region42: #{token_receiver.1} parent=39 // pred_check_branch
        %3095 = sbr.rel (%p3093) target = $region44
      $region43: #{token_receiver.1} parent=39 // pred_region
        %s3096 = smul.u32 32, %s16
      $region44: #{token_receiver.1} parent=39 // pred_fallthru
        _
    $region40: #{token_receiver.1} parent=5 // pred_fallthru
      _
    %p3097 = scmp.le.s32.totalorder 2, %s11
    // Predicated region
    $region45: #{token_receiver.1} parent=5 // pred_check
      %p3098 = pneg %p3097
    $region46: #{token_receiver.1} parent=5 // pred_check_branch
      %3100 = sbr.rel (%p3098) target = $region48
    $region47: #{token_receiver.1} parent=5 // pred_region
      %s3101 = ssub.s32 %s11, 2
      // Predicated region
      $region49: #{token_receiver.1} parent=47 // pred_check
        %p3102 = pneg %p150
      $region50: #{token_receiver.1} parent=47 // pred_check_branch
        %3104 = sbr.rel (%p3102) target = $region52
      $region51: #{token_receiver.1} parent=47 // pred_region
        %s3105 = smul.u32 32, %s17
        %p3106 = scmp.lt.s32.totalorder %s3105, 63
        %s3107 = scalar_select %p3106, %s3105, 63
        %s3108 = smul.addr %s3107, 8
        %s3109 = scalar_lea.vmem %s5, %s3108
      $region52: #{token_receiver.1} parent=47 // pred_fallthru
        _
    $region48: #{token_receiver.1} parent=5 // pred_fallthru
      _
  $region6: #{token_receiver.1} parent=0 // loop_footer
    %s15 = sadd.s32 1, %s11
  $region7: #{token_receiver.1} parent=0 // loop_footer_branch
    %10 = sbr.rel target = $region3
  $region8: #{token_receiver.1} parent=0 // loop_exit
    _

</llo_original>
